<compile_context>
chip_gen: v7x
topology: tpu7x:2x2x1
jax: 0.10.0
libtpu: 0.0.40
codegen_flags: <defaults>
</compile_context>

<pallas_src>
import functools

import jax
import jax.numpy as jnp
from jax import lax
from jax.experimental import pallas as pl
from jax.experimental.pallas import tpu as pltpu


# ---------------------------------------------------------------------------
# Kernel
# ---------------------------------------------------------------------------
def _mha_split_kernel(q_ref, k_ref, v_ref, wq_ref, wk_ref, wv_ref,
                      o_ref, kh_ref, vh_ref, *, hg, hd, dv, compute_dtype):
    # q_ref:  (tq, D)           query tile, model dim
    # k_ref:  (T, D), v_ref: (T, D)
    # wq_ref/wk_ref: (D, hg*hd) this head-group's (pre-scaled for wq) slices
    # wv_ref: (D, hg*dv)
    # o_ref:  (tq, hg*dv)       head-group slab of the (B, S, H*dv) output
    # kh_ref: (T, hg*hd) VMEM scratch, vh_ref: (T, hg*dv) VMEM scratch
    sq = pl.program_id(2)

    # Project K and V once per (batch, head_group); cache across q tiles.
    @pl.when(sq == 0)
    def _project_kv():
        kc = k_ref[...].astype(compute_dtype)
        vc = v_ref[...].astype(compute_dtype)
        kh_ref[...] = jnp.dot(kc, wk_ref[...],
                              preferred_element_type=jnp.float32).astype(compute_dtype)
        vh_ref[...] = jnp.dot(vc, wv_ref[...],
                              preferred_element_type=jnp.float32).astype(compute_dtype)

    qc = q_ref[...].astype(compute_dtype)
    # Softmax scale is folded into wq (wrapper pre-scales), no extra multiply here.
    qh = jnp.dot(qc, wq_ref[...],
                 preferred_element_type=jnp.float32).astype(compute_dtype)  # (tq, hg*hd)

    kh = kh_ref[...]   # (T, hg*hd)
    vh = vh_ref[...]   # (T, hg*dv)

    for h in range(hg):  # small static unroll over heads within the group
        qh_h = qh[:, h * hd:(h + 1) * hd]          # (tq, hd)
        kh_h = kh[:, h * hd:(h + 1) * hd]          # (T, hd)
        vh_h = vh[:, h * dv:(h + 1) * dv]          # (T, dv)

        # scores: contract over head_dim of both operands (no kh transpose).
        s = lax.dot_general(qh_h, kh_h, (((1,), (1,)), ((), ())),
                            preferred_element_type=jnp.float32)          # (tq, T)
        s = s - jnp.max(s, axis=-1, keepdims=True)
        p = jnp.exp(s)
        p = p * pl.reciprocal(jnp.sum(p, axis=-1, keepdims=True), approx=True)

        o_ref[:, h * dv:(h + 1) * dv] = jnp.dot(
            p.astype(compute_dtype), vh_h,
            preferred_element_type=jnp.float32).astype(o_ref.dtype)


# ---------------------------------------------------------------------------
# Wrapper helpers
# ---------------------------------------------------------------------------
def _pick_head_group(n_heads, head_dim):
    """Largest divisor of n_heads such that head_group * head_dim ~ 128 lanes."""
    target = max(1, 128 // max(head_dim, 1))
    hg = min(n_heads, target)
    while n_heads % hg:
        hg -= 1
    return hg


def _pick_seq_tile(S, max_tile=256):
    """Largest multiple-of-8 divisor of S that is <= max_tile (or S itself)."""
    if S <= max_tile:
        return S
    t = (max_tile // 8) * 8
    while t >= 8:
        if S % t == 0:
            return t
        t -= 8
    return S


def prepare_mha_split_weights(wq, wk, wv, n_heads, compute_dtype=None):
    """One-time weight re-layout — hoist out of the per-call path (do at model load).

    wq, wk: PyTorch Linear weights (out_features, in_features) = (D, D)
    wv:     (out_d, D)
    Returns head-grouped, pre-transposed weights:
      wq_g, wk_g: (G, D, hg*hd)  (wq pre-scaled by head_dim**-0.5)
      wv_g:       (G, D, hg*dv)
    plus the head-group size hg.
    """
    D = wq.shape[1]
    out_d = wv.shape[0]
    hd = D // n_heads
    dv = out_d // n_heads
    hg = _pick_head_group(n_heads, hd)
    G = n_heads // hg
    scale = float(hd) ** (-0.5)
    cdt = wq.dtype if compute_dtype is None else compute_dtype

    wq_g = (wq.T * scale).reshape(D, G, hg * hd).transpose(1, 0, 2).astype(cdt)
    wk_g = wk.T.reshape(D, G, hg * hd).transpose(1, 0, 2).astype(cdt)
    wv_g = wv.T.reshape(D, G, hg * dv).transpose(1, 0, 2).astype(cdt)
    return wq_g, wk_g, wv_g, hg


def mha_split_pallas(q, k, v, wq_g, wk_g, wv_g, hg, *, max_q_tile=256):
    """Run the Pallas kernel with pre-laid-out (grouped) weights."""
    B, S, D = q.shape
    _, T, _ = k.shape
    G, _, gw_q = wq_g.shape
    gw_v = wv_g.shape[2]
    hd = gw_q // hg
    dv = gw_v // hg
    out_d = G * gw_v
    compute_dtype = wq_g.dtype

    tq = _pick_seq_tile(S, max_q_tile)
    n_sq = S // tq

    kernel = functools.partial(_mha_split_kernel,
                               hg=hg, hd=hd, dv=dv, compute_dtype=compute_dtype)

    # Rough VMEM budget: double-buffered blocks + cached K/V projections + live f32 tiles.
    in_item = jnp.dtype(q.dtype).itemsize
    c_item = jnp.dtype(compute_dtype).itemsize
    block_bytes = (tq * D * in_item            # q tile
                   + 2 * T * D * in_item       # k, v
                   + 2 * D * gw_q * c_item     # wq, wk group slices
                   + D * gw_v * c_item         # wv group slice
                   + tq * gw_v * in_item)      # output slab
    scratch_bytes = T * (gw_q + gw_v) * c_item
    live_bytes = (tq * (gw_q + gw_v) + 2 * tq * T) * 4
    est = 2 * block_bytes + scratch_bytes + live_bytes
    compiler_kwargs = {}
    if est > 24 * 1024 * 1024:
        compiler_kwargs["vmem_limit_bytes"] = int(min(2 * est, 64 * 1024 * 1024))

    out = pl.pallas_call(
        kernel,
        out_shape=jax.ShapeDtypeStruct((B, S, out_d), q.dtype),
        grid_spec=pltpu.PrefetchScalarGridSpec(
            num_scalar_prefetch=0,
            grid=(B, G, n_sq),
            in_specs=[
                pl.BlockSpec((None, tq, D), lambda b, g, sq: (b, sq, 0)),   # q tile
                pl.BlockSpec((None, T, D), lambda b, g, sq: (b, 0, 0)),     # k (full)
                pl.BlockSpec((None, T, D), lambda b, g, sq: (b, 0, 0)),     # v (full)
                pl.BlockSpec((None, D, gw_q), lambda b, g, sq: (g, 0, 0)),  # wq group
                pl.BlockSpec((None, D, gw_q), lambda b, g, sq: (g, 0, 0)),  # wk group
                pl.BlockSpec((None, D, gw_v), lambda b, g, sq: (g, 0, 0)),  # wv group
            ],
            out_specs=pl.BlockSpec((None, tq, gw_v), lambda b, g, sq: (b, sq, g)),
            scratch_shapes=[
                pltpu.VMEM((T, gw_q), compute_dtype),   # cached K projection
                pltpu.VMEM((T, gw_v), compute_dtype),   # cached V projection
            ],
        ),
        compiler_params=pltpu.CompilerParams(
            dimension_semantics=("parallel", "parallel", "arbitrary"),
            **compiler_kwargs),
    )(q, k, v, wq_g, wk_g, wv_g)
    return out   # already (B, S, H*dv) — no post-kernel transpose needed


def mha_split(q, k, v, wq, wk, wv, n_heads, compute_dtype=None, max_q_tile=256):
    """Convenience wrapper: MHA_split.forward (mask=None, eval mode)."""
    cdt = q.dtype if compute_dtype is None else compute_dtype
    wq_g, wk_g, wv_g, hg = prepare_mha_split_weights(wq, wk, wv, n_heads, cdt)
    return mha_split_pallas(q, k, v, wq_g, wk_g, wv_g, hg, max_q_tile=max_q_tile)


# ---------------------------------------------------------------------------
# Pure-JAX reference (replicates the PyTorch forward exactly, all f32)
# ---------------------------------------------------------------------------
def mha_split_reference(q, k, v, wq, wk, wv, n_heads):
    B, S, D = q.shape
    out_d = wv.shape[0]
    hd = D // n_heads
    dv = out_d // n_heads
    scale = float(hd) ** (-0.5)

    def proj(x, w, head_dim):
        y = jnp.einsum('bsd,od->bso', x, w)                 # Linear: x @ W.T
        return y.reshape(x.shape[0], x.shape[1], n_heads, head_dim)

    Q = proj(q, wq, hd)   # (B, S, H, hd)
    K = proj(k, wk, hd)   # (B, T, H, hd)
    V = proj(v, wv, dv)   # (B, T, H, dv)

    attn = jnp.einsum('bshd,bthd->bsht', Q, K) * scale      # (B, S, H, T)
    attn = jax.nn.softmax(attn, axis=-1)
    ret = jnp.einsum('bshd,bths->bthd', V, attn)            # (B, S_q, H, dv)
    return ret.reshape(B, S, out_d)


# ---------------------------------------------------------------------------
if __name__ == "__main__":
    B, S, T = 2, 8, 8
    d_model, n_heads, out_d = 32, 4, 32

    key = jax.random.PRNGKey(0)
    kq, kk, kv, kwq, kwk, kwv = jax.random.split(key, 6)

    q = jax.random.normal(kq, (B, S, d_model), dtype=jnp.float32)
    k = jax.random.normal(kk, (B, T, d_model), dtype=jnp.float32)
    v = jax.random.normal(kv, (B, T, d_model), dtype=jnp.float32)

    # Deterministic Linear weights (trunc-normal, std=0.02), bias=False as in module.
    wq = 0.02 * jax.random.truncated_normal(kwq, -2.0, 2.0, (d_model, d_model), jnp.float32)
    wk = 0.02 * jax.random.truncated_normal(kwk, -2.0, 2.0, (d_model, d_model), jnp.float32)
    wv = 0.02 * jax.random.truncated_normal(kwv, -2.0, 2.0, (out_d, d_model), jnp.float32)

    ref = mha_split_reference(q, k, v, wq, wk, wv, n_heads)

    # f32 compute path (tolerance covers the EUP approximate reciprocal in the softmax).
    out = jax.block_until_ready(
        mha_split(q, k, v, wq, wk, wv, n_heads, compute_dtype=jnp.float32))
    assert out.shape == (B, S, out_d), out.shape
    err = float(jnp.max(jnp.abs(out - ref)))
    assert jnp.allclose(out, ref, atol=2e-3, rtol=2e-3), err

    # bf16 MXU path (f32 accumulation) — looser tolerance vs the all-f32 reference.
    out_bf16 = jax.block_until_ready(
        mha_split(q, k, v, wq, wk, wv, n_heads, compute_dtype=jnp.bfloat16))
    err_bf16 = float(jnp.max(jnp.abs(out_bf16 - ref)))
    assert jnp.allclose(out_bf16, ref, atol=5e-2, rtol=5e-2), err_bf16

    print("KERNEL_OK")
</pallas_src>

<mosaic_0001>
module attributes {stable_mosaic.version = 11 : i64} {
  func.func @_mha_split_kernel(%arg0: i32, %arg1: i32, %arg2: i32, %arg3: memref<1x8x32xf32, #tpu.memory_space<vmem>>, %arg4: memref<1x8x32xf32, #tpu.memory_space<vmem>>, %arg5: memref<1x8x32xf32, #tpu.memory_space<vmem>>, %arg6: memref<1x32x32xf32, #tpu.memory_space<vmem>>, %arg7: memref<1x32x32xf32, #tpu.memory_space<vmem>>, %arg8: memref<1x32x32xf32, #tpu.memory_space<vmem>>, %arg9: memref<1x8x32xf32, #tpu.memory_space<vmem>>, %arg10: memref<8x32xf32, #tpu.memory_space<vmem>>, %arg11: memref<8x32xf32, #tpu.memory_space<vmem>>) attributes {dimension_semantics = [#tpu.dimension_semantics<parallel>, #tpu.dimension_semantics<parallel>, #tpu.dimension_semantics<arbitrary>], iteration_bounds = array<i64: 2, 1, 1>, scalar_prefetch = 0 : i64, scratch_operands = 2 : i64, tpu.core_type = #tpu.core_type<tc>, window_params = [{transform_indices = @transform_0, window_bounds = array<i64: 1, 8, 32>}, {transform_indices = @transform_1, window_bounds = array<i64: 1, 8, 32>}, {transform_indices = @transform_2, window_bounds = array<i64: 1, 8, 32>}, {transform_indices = @transform_3, window_bounds = array<i64: 1, 32, 32>}, {transform_indices = @transform_4, window_bounds = array<i64: 1, 32, 32>}, {transform_indices = @transform_5, window_bounds = array<i64: 1, 32, 32>}, {transform_indices = @transform_6, window_bounds = array<i64: 1, 8, 32>}]} {
    %c0_i32 = arith.constant 0 : i32
    %0 = arith.cmpi eq, %arg2, %c0_i32 : i32
    %1 = arith.extui %0 : i1 to i32
    %c0_i32_0 = arith.constant 0 : i32
    %2 = arith.cmpi ne, %1, %c0_i32_0 : i32
    scf.if %2 {
      %c0_35 = arith.constant 0 : index
      %c0_36 = arith.constant 0 : index
      %c0_37 = arith.constant 0 : index
      %82 = vector.load %arg4[%c0_35, %c0_36, %c0_37] : memref<1x8x32xf32, #tpu.memory_space<vmem>>, vector<1x8x32xf32>
      %83 = vector.shape_cast %82 : vector<1x8x32xf32> to vector<8x32xf32>
      %c0_38 = arith.constant 0 : index
      %c0_39 = arith.constant 0 : index
      %c0_40 = arith.constant 0 : index
      %84 = vector.load %arg5[%c0_38, %c0_39, %c0_40] : memref<1x8x32xf32, #tpu.memory_space<vmem>>, vector<1x8x32xf32>
      %85 = vector.shape_cast %84 : vector<1x8x32xf32> to vector<8x32xf32>
      %c0_41 = arith.constant 0 : index
      %c0_42 = arith.constant 0 : index
      %c0_43 = arith.constant 0 : index
      %86 = vector.load %arg7[%c0_41, %c0_42, %c0_43] : memref<1x32x32xf32, #tpu.memory_space<vmem>>, vector<1x32x32xf32>
      %87 = vector.shape_cast %86 : vector<1x32x32xf32> to vector<32x32xf32>
      %cst_44 = arith.constant dense<0.000000e+00> : vector<8x32xf32>
      %88 = tpu.matmul %83, %87, %cst_44 {dimension_numbers = #tpu.dot_dimension_numbers<[1], [0], [0], [1], [0, 0, 1, 1], [], []>} : vector<8x32xf32>, vector<32x32xf32>, vector<8x32xf32> -> vector<8x32xf32>
      %c0_45 = arith.constant 0 : index
      %c0_46 = arith.constant 0 : index
      %89 = vector.load %arg10[%c0_45, %c0_46] : memref<8x32xf32, #tpu.memory_space<vmem>>, vector<8x32xf32>
      tpu.vector_store %arg10[%c0_45, %c0_46], %88 {strides = array<i32>} : memref<8x32xf32, #tpu.memory_space<vmem>>, vector<8x32xf32>,
      %c0_47 = arith.constant 0 : index
      %c0_48 = arith.constant 0 : index
      %c0_49 = arith.constant 0 : index
      %90 = vector.load %arg8[%c0_47, %c0_48, %c0_49] : memref<1x32x32xf32, #tpu.memory_space<vmem>>, vector<1x32x32xf32>
      %91 = vector.shape_cast %90 : vector<1x32x32xf32> to vector<32x32xf32>
      %cst_50 = arith.constant dense<0.000000e+00> : vector<8x32xf32>
      %92 = tpu.matmul %85, %91, %cst_50 {dimension_numbers = #tpu.dot_dimension_numbers<[1], [0], [0], [1], [0, 0, 1, 1], [], []>} : vector<8x32xf32>, vector<32x32xf32>, vector<8x32xf32> -> vector<8x32xf32>
      %c0_51 = arith.constant 0 : index
      %c0_52 = arith.constant 0 : index
      %93 = vector.load %arg11[%c0_51, %c0_52] : memref<8x32xf32, #tpu.memory_space<vmem>>, vector<8x32xf32>
      tpu.vector_store %arg11[%c0_51, %c0_52], %92 {strides = array<i32>} : memref<8x32xf32, #tpu.memory_space<vmem>>, vector<8x32xf32>,
    } else {
    }
    %c0 = arith.constant 0 : index
    %c0_1 = arith.constant 0 : index
    %c0_2 = arith.constant 0 : index
    %3 = vector.load %arg3[%c0, %c0_1, %c0_2] : memref<1x8x32xf32, #tpu.memory_space<vmem>>, vector<1x8x32xf32>
    %4 = vector.shape_cast %3 : vector<1x8x32xf32> to vector<8x32xf32>
    %c0_3 = arith.constant 0 : index
    %c0_4 = arith.constant 0 : index
    %c0_5 = arith.constant 0 : index
    %5 = vector.load %arg6[%c0_3, %c0_4, %c0_5] : memref<1x32x32xf32, #tpu.memory_space<vmem>>, vector<1x32x32xf32>
    %6 = vector.shape_cast %5 : vector<1x32x32xf32> to vector<32x32xf32>
    %cst = arith.constant dense<0.000000e+00> : vector<8x32xf32>
    %7 = tpu.matmul %4, %6, %cst {dimension_numbers = #tpu.dot_dimension_numbers<[1], [0], [0], [1], [0, 0, 1, 1], [], []>} : vector<8x32xf32>, vector<32x32xf32>, vector<8x32xf32> -> vector<8x32xf32>
    %c0_6 = arith.constant 0 : index
    %c0_7 = arith.constant 0 : index
    %8 = vector.load %arg10[%c0_6, %c0_7] : memref<8x32xf32, #tpu.memory_space<vmem>>, vector<8x32xf32>
    %c0_8 = arith.constant 0 : index
    %c0_9 = arith.constant 0 : index
    %9 = vector.load %arg11[%c0_8, %c0_9] : memref<8x32xf32, #tpu.memory_space<vmem>>, vector<8x32xf32>
    %10 = vector.extract_strided_slice %7 {offsets = [0, 0], sizes = [8, 8], strides = [1, 1]} : vector<8x32xf32> to vector<8x8xf32>
    %11 = vector.extract_strided_slice %8 {offsets = [0, 0], sizes = [8, 8], strides = [1, 1]} : vector<8x32xf32> to vector<8x8xf32>
    %12 = vector.extract_strided_slice %9 {offsets = [0, 0], sizes = [8, 8], strides = [1, 1]} : vector<8x32xf32> to vector<8x8xf32>
    %cst_10 = arith.constant dense<0.000000e+00> : vector<8x8xf32>
    %13 = tpu.matmul %10, %11, %cst_10 {dimension_numbers = #tpu.dot_dimension_numbers<[1], [1], [0], [0], [0, 0, 1, 0], [], []>} : vector<8x8xf32>, vector<8x8xf32>, vector<8x8xf32> -> vector<8x8xf32>
    %cst_11 = arith.constant dense<0xFF800000> : vector<8xf32>
    %14 = vector.multi_reduction <maximumf>, %13, %cst_11 [1] : vector<8x8xf32> to vector<8xf32>
    %15 = vector.shape_cast %14 : vector<8xf32> to vector<8x1xf32>
    %16 = vector.broadcast %15 : vector<8x1xf32> to vector<8x8xf32>
    %17 = arith.subf %13, %16 : vector<8x8xf32>
    %18 = math.exp %17 : vector<8x8xf32>
    %cst_12 = arith.constant dense<0.000000e+00> : vector<8xf32>
    %19 = vector.multi_reduction <add>, %18, %cst_12 [1] : vector<8x8xf32> to vector<8xf32>
    %20 = vector.shape_cast %19 : vector<8xf32> to vector<8x1xf32>
    %21 = tpu.reciprocal %20 {approx = true} : vector<8x1xf32> -> vector<8x1xf32>
    %22 = vector.broadcast %21 : vector<8x1xf32> to vector<8x8xf32>
    %23 = arith.mulf %18, %22 : vector<8x8xf32>
    %cst_13 = arith.constant dense<0.000000e+00> : vector<8x8xf32>
    %24 = tpu.matmul %23, %12, %cst_13 {dimension_numbers = #tpu.dot_dimension_numbers<[1], [0], [0], [1], [0, 0, 1, 1], [], []>} : vector<8x8xf32>, vector<8x8xf32>, vector<8x8xf32> -> vector<8x8xf32>
    %c0_14 = arith.constant 0 : index
    %c0_15 = arith.constant 0 : index
    %c0_16 = arith.constant 0 : index
    %25 = vector.load %arg9[%c0_14, %c0_15, %c0_16] : memref<1x8x32xf32, #tpu.memory_space<vmem>>, vector<1x8x8xf32>
    %26 = vector.shape_cast %25 : vector<1x8x8xf32> to vector<8x8xf32>
    %27 = vector.shape_cast %24 : vector<8x8xf32> to vector<1x8x8xf32>
    tpu.vector_store %arg9[%c0_14, %c0_15, %c0_16], %27 {strides = array<i32>} : memref<1x8x32xf32, #tpu.memory_space<vmem>>, vector<1x8x8xf32>,
    %28 = vector.extract_strided_slice %7 {offsets = [0, 8], sizes = [8, 8], strides = [1, 1]} : vector<8x32xf32> to vector<8x8xf32>
    %29 = vector.extract_strided_slice %8 {offsets = [0, 8], sizes = [8, 8], strides = [1, 1]} : vector<8x32xf32> to vector<8x8xf32>
    %30 = vector.extract_strided_slice %9 {offsets = [0, 8], sizes = [8, 8], strides = [1, 1]} : vector<8x32xf32> to vector<8x8xf32>
    %cst_17 = arith.constant dense<0.000000e+00> : vector<8x8xf32>
    %31 = tpu.matmul %28, %29, %cst_17 {dimension_numbers = #tpu.dot_dimension_numbers<[1], [1], [0], [0], [0, 0, 1, 0], [], []>} : vector<8x8xf32>, vector<8x8xf32>, vector<8x8xf32> -> vector<8x8xf32>
    %cst_18 = arith.constant dense<0xFF800000> : vector<8xf32>
    %32 = vector.multi_reduction <maximumf>, %31, %cst_18 [1] : vector<8x8xf32> to vector<8xf32>
    %33 = vector.shape_cast %32 : vector<8xf32> to vector<8x1xf32>
    %34 = vector.broadcast %33 : vector<8x1xf32> to vector<8x8xf32>
    %35 = arith.subf %31, %34 : vector<8x8xf32>
    %36 = math.exp %35 : vector<8x8xf32>
    %cst_19 = arith.constant dense<0.000000e+00> : vector<8xf32>
    %37 = vector.multi_reduction <add>, %36, %cst_19 [1] : vector<8x8xf32> to vector<8xf32>
    %38 = vector.shape_cast %37 : vector<8xf32> to vector<8x1xf32>
    %39 = tpu.reciprocal %38 {approx = true} : vector<8x1xf32> -> vector<8x1xf32>
    %40 = vector.broadcast %39 : vector<8x1xf32> to vector<8x8xf32>
    %41 = arith.mulf %36, %40 : vector<8x8xf32>
    %cst_20 = arith.constant dense<0.000000e+00> : vector<8x8xf32>
    %42 = tpu.matmul %41, %30, %cst_20 {dimension_numbers = #tpu.dot_dimension_numbers<[1], [0], [0], [1], [0, 0, 1, 1], [], []>} : vector<8x8xf32>, vector<8x8xf32>, vector<8x8xf32> -> vector<8x8xf32>
    %c0_21 = arith.constant 0 : index
    %c0_22 = arith.constant 0 : index
    %c8 = arith.constant 8 : index
    %43 = vector.load %arg9[%c0_21, %c0_22, %c8] : memref<1x8x32xf32, #tpu.memory_space<vmem>>, vector<1x8x8xf32>
    %44 = vector.shape_cast %43 : vector<1x8x8xf32> to vector<8x8xf32>
    %45 = vector.shape_cast %42 : vector<8x8xf32> to vector<1x8x8xf32>
    tpu.vector_store %arg9[%c0_21, %c0_22, %c8], %45 {strides = array<i32>} : memref<1x8x32xf32, #tpu.memory_space<vmem>>, vector<1x8x8xf32>,
    %46 = vector.extract_strided_slice %7 {offsets = [0, 16], sizes = [8, 8], strides = [1, 1]} : vector<8x32xf32> to vector<8x8xf32>
    %47 = vector.extract_strided_slice %8 {offsets = [0, 16], sizes = [8, 8], strides = [1, 1]} : vector<8x32xf32> to vector<8x8xf32>
    %48 = vector.extract_strided_slice %9 {offsets = [0, 16], sizes = [8, 8], strides = [1, 1]} : vector<8x32xf32> to vector<8x8xf32>
    %cst_23 = arith.constant dense<0.000000e+00> : vector<8x8xf32>
    %49 = tpu.matmul %46, %47, %cst_23 {dimension_numbers = #tpu.dot_dimension_numbers<[1], [1], [0], [0], [0, 0, 1, 0], [], []>} : vector<8x8xf32>, vector<8x8xf32>, vector<8x8xf32> -> vector<8x8xf32>
    %cst_24 = arith.constant dense<0xFF800000> : vector<8xf32>
    %50 = vector.multi_reduction <maximumf>, %49, %cst_24 [1] : vector<8x8xf32> to vector<8xf32>
    %51 = vector.shape_cast %50 : vector<8xf32> to vector<8x1xf32>
    %52 = vector.broadcast %51 : vector<8x1xf32> to vector<8x8xf32>
    %53 = arith.subf %49, %52 : vector<8x8xf32>
    %54 = math.exp %53 : vector<8x8xf32>
    %cst_25 = arith.constant dense<0.000000e+00> : vector<8xf32>
    %55 = vector.multi_reduction <add>, %54, %cst_25 [1] : vector<8x8xf32> to vector<8xf32>
    %56 = vector.shape_cast %55 : vector<8xf32> to vector<8x1xf32>
    %57 = tpu.reciprocal %56 {approx = true} : vector<8x1xf32> -> vector<8x1xf32>
    %58 = vector.broadcast %57 : vector<8x1xf32> to vector<8x8xf32>
    %59 = arith.mulf %54, %58 : vector<8x8xf32>
    %cst_26 = arith.constant dense<0.000000e+00> : vector<8x8xf32>
    %60 = tpu.matmul %59, %48, %cst_26 {dimension_numbers = #tpu.dot_dimension_numbers<[1], [0], [0], [1], [0, 0, 1, 1], [], []>} : vector<8x8xf32>, vector<8x8xf32>, vector<8x8xf32> -> vector<8x8xf32>
    %c0_27 = arith.constant 0 : index
    %c0_28 = arith.constant 0 : index
    %c16 = arith.constant 16 : index
    %61 = vector.load %arg9[%c0_27, %c0_28, %c16] : memref<1x8x32xf32, #tpu.memory_space<vmem>>, vector<1x8x8xf32>
    %62 = vector.shape_cast %61 : vector<1x8x8xf32> to vector<8x8xf32>
    %63 = vector.shape_cast %60 : vector<8x8xf32> to vector<1x8x8xf32>
    tpu.vector_store %arg9[%c0_27, %c0_28, %c16], %63 {strides = array<i32>} : memref<1x8x32xf32, #tpu.memory_space<vmem>>, vector<1x8x8xf32>,
    %64 = vector.extract_strided_slice %7 {offsets = [0, 24], sizes = [8, 8], strides = [1, 1]} : vector<8x32xf32> to vector<8x8xf32>
    %65 = vector.extract_strided_slice %8 {offsets = [0, 24], sizes = [8, 8], strides = [1, 1]} : vector<8x32xf32> to vector<8x8xf32>
    %66 = vector.extract_strided_slice %9 {offsets = [0, 24], sizes = [8, 8], strides = [1, 1]} : vector<8x32xf32> to vector<8x8xf32>
    %cst_29 = arith.constant dense<0.000000e+00> : vector<8x8xf32>
    %67 = tpu.matmul %64, %65, %cst_29 {dimension_numbers = #tpu.dot_dimension_numbers<[1], [1], [0], [0], [0, 0, 1, 0], [], []>} : vector<8x8xf32>, vector<8x8xf32>, vector<8x8xf32> -> vector<8x8xf32>
    %cst_30 = arith.constant dense<0xFF800000> : vector<8xf32>
    %68 = vector.multi_reduction <maximumf>, %67, %cst_30 [1] : vector<8x8xf32> to vector<8xf32>
    %69 = vector.shape_cast %68 : vector<8xf32> to vector<8x1xf32>
    %70 = vector.broadcast %69 : vector<8x1xf32> to vector<8x8xf32>
    %71 = arith.subf %67, %70 : vector<8x8xf32>
    %72 = math.exp %71 : vector<8x8xf32>
    %cst_31 = arith.constant dense<0.000000e+00> : vector<8xf32>
    %73 = vector.multi_reduction <add>, %72, %cst_31 [1] : vector<8x8xf32> to vector<8xf32>
    %74 = vector.shape_cast %73 : vector<8xf32> to vector<8x1xf32>
    %75 = tpu.reciprocal %74 {approx = true} : vector<8x1xf32> -> vector<8x1xf32>
    %76 = vector.broadcast %75 : vector<8x1xf32> to vector<8x8xf32>
    %77 = arith.mulf %72, %76 : vector<8x8xf32>
    %cst_32 = arith.constant dense<0.000000e+00> : vector<8x8xf32>
    %78 = tpu.matmul %77, %66, %cst_32 {dimension_numbers = #tpu.dot_dimension_numbers<[1], [0], [0], [1], [0, 0, 1, 1], [], []>} : vector<8x8xf32>, vector<8x8xf32>, vector<8x8xf32> -> vector<8x8xf32>
    %c0_33 = arith.constant 0 : index
    %c0_34 = arith.constant 0 : index
    %c24 = arith.constant 24 : index
    %79 = vector.load %arg9[%c0_33, %c0_34, %c24] : memref<1x8x32xf32, #tpu.memory_space<vmem>>, vector<1x8x8xf32>
    %80 = vector.shape_cast %79 : vector<1x8x8xf32> to vector<8x8xf32>
    %81 = vector.shape_cast %78 : vector<8x8xf32> to vector<1x8x8xf32>
    tpu.vector_store %arg9[%c0_33, %c0_34, %c24], %81 {strides = array<i32>} : memref<1x8x32xf32, #tpu.memory_space<vmem>>, vector<1x8x8xf32>,
    return
  }
  func.func @transform_0(%arg0: i32, %arg1: i32, %arg2: i32) -> (i32, i32, i32) {
    %c0_i32 = arith.constant 0 : i32
    %c0_i32_0 = arith.constant 0 : i32
    return %arg0, %arg2, %c0_i32 : i32, i32, i32
  }
  func.func @transform_1(%arg0: i32, %arg1: i32, %arg2: i32) -> (i32, i32, i32) {
    %c0_i32 = arith.constant 0 : i32
    %c0_i32_0 = arith.constant 0 : i32
    %c0_i32_1 = arith.constant 0 : i32
    return %arg0, %c0_i32, %c0_i32_0 : i32, i32, i32
  }
  func.func @transform_2(%arg0: i32, %arg1: i32, %arg2: i32) -> (i32, i32, i32) {
    %c0_i32 = arith.constant 0 : i32
    %c0_i32_0 = arith.constant 0 : i32
    %c0_i32_1 = arith.constant 0 : i32
    return %arg0, %c0_i32, %c0_i32_0 : i32, i32, i32
  }
  func.func @transform_3(%arg0: i32, %arg1: i32, %arg2: i32) -> (i32, i32, i32) {
    %c0_i32 = arith.constant 0 : i32
    %c0_i32_0 = arith.constant 0 : i32
    %c0_i32_1 = arith.constant 0 : i32
    return %arg1, %c0_i32, %c0_i32_0 : i32, i32, i32
  }
  func.func @transform_4(%arg0: i32, %arg1: i32, %arg2: i32) -> (i32, i32, i32) {
    %c0_i32 = arith.constant 0 : i32
    %c0_i32_0 = arith.constant 0 : i32
    %c0_i32_1 = arith.constant 0 : i32
    return %arg1, %c0_i32, %c0_i32_0 : i32, i32, i32
  }
  func.func @transform_5(%arg0: i32, %arg1: i32, %arg2: i32) -> (i32, i32, i32) {
    %c0_i32 = arith.constant 0 : i32
    %c0_i32_0 = arith.constant 0 : i32
    %c0_i32_1 = arith.constant 0 : i32
    return %arg1, %c0_i32, %c0_i32_0 : i32, i32, i32
  }
  func.func @transform_6(%arg0: i32, %arg1: i32, %arg2: i32) -> (i32, i32, i32) {
    %c0_i32 = arith.constant 0 : i32
    return %arg0, %arg2, %arg1 : i32, i32, i32
  }
}

</mosaic_0001>

<llo_original>
// kernel: tpu_custom_call.1
$region0: #{tpu_custom_call.1}
  #allocation0 [shape = 'u32[]', space=smem, size = 0x4, offset = 0x4, fixed_abs, tag = 'smem constant byte address 0x4 - core index']
  #allocation1 [shape = 'u32[144,128]{1,0:T(1,128)}', space=vmem, size = 0x12000, scoped, tag = 'internal scratch']
  #allocation2 [shape = 'f32[8,32]{1,0:T(8,128)}', space=vmem, size = 0x1000, scoped, tag = 'scratch operand']
  #allocation3 [shape = 'f32[8,32]{1,0:T(8,128)}', space=vmem, size = 0x1000, scoped, tag = 'scratch operand']
  %s0 = inlined_call_operand.hbm [shape: f32[2,8,32], index: 0, kind: input, shape index: {}]
  %s1 = inlined_call_operand.hbm [shape: f32[2,8,32], index: 1, kind: input, shape index: {}]
  %s2 = inlined_call_operand.hbm [shape: f32[2,8,32], index: 2, kind: input, shape index: {}]
  %s3 = inlined_call_operand.hbm [shape: f32[1,32,32], index: 3, kind: input, shape index: {}]
  %s4 = inlined_call_operand.hbm [shape: f32[1,32,32], index: 4, kind: input, shape index: {}]
  %s5 = inlined_call_operand.hbm [shape: f32[1,32,32], index: 5, kind: input, shape index: {}]
  %s6 = inlined_call_operand.hbm [shape: f32[2,8,32], index: 6, kind: output, shape index: {}]
  %s7 = sld [smem:[#allocation0]]
  $region85: #{tpu_custom_call.1} parent=0
    _
  %s9 = ssub.s32 1, %s7
  %s10 = scalar_select 0, %s9, %s7
  $region1: #{tpu_custom_call.1} parent=0
    #allocation4 [shape = 'u8[8192]{0}', space=vmem, size = 0x2000, scoped, tag = 'input window, operand 0']
    #allocation5 [shape = 's32[2]{0}', space=sflag, size = 0x8, scoped, tag = 'scoped memory for tpu_custom_call.1']
    #allocation6 [shape = 's32[2]{0}', space=sflag, size = 0x8, scoped, tag = 'scoped memory for tpu_custom_call.1']
    #allocation7 [shape = 'u8[8192]{0}', space=vmem, size = 0x2000, scoped, tag = 'input window, operand 1']
    #allocation8 [shape = 's32[2]{0}', space=sflag, size = 0x8, scoped, tag = 'scoped memory for tpu_custom_call.1']
    #allocation9 [shape = 'u8[8192]{0}', space=vmem, size = 0x2000, scoped, tag = 'input window, operand 2']
    #allocation10 [shape = 'u8[16384]{0}', space=vmem, size = 0x4000, scoped, tag = 'input window, operand 3, single buffered']
    #allocation11 [shape = 's32[1]{0}', space=sflag, size = 0x4, scoped, tag = 'scoped memory for tpu_custom_call.1']
    #allocation12 [shape = 'u8[16384]{0}', space=vmem, size = 0x4000, scoped, tag = 'input window, operand 4, single buffered']
    #allocation13 [shape = 'u8[16384]{0}', space=vmem, size = 0x4000, scoped, tag = 'input window, operand 5, single buffered']
    #allocation14 [shape = 's32[1]{0}', space=sflag, size = 0x4, scoped, tag = 'scoped memory for tpu_custom_call.1']
    #allocation15 [shape = 'u8[8192]{0}', space=vmem, size = 0x2000, scoped, tag = 'output window, operand 0']
    %11 = vsyncpa [#allocation5], 0
    %s12 = scalar_lea.sflag [#allocation5], 1
    %13 = vsyncpa %s12, 0
    %14 = vsyncpa [#allocation8], 0
    %s15 = scalar_lea.sflag [#allocation8], 1
    %16 = vsyncpa %s15, 0
    %17 = vsyncpa [#allocation11], 0
    %18 = vsyncpa [#allocation14], 0
    %19 = vsyncpa [#allocation6], 0
    %s20 = scalar_lea.sflag [#allocation6], 1
    %21 = vsyncpa %s20, 0
    loop: start=0, step=1, limit=4
    $region2: #{tpu_custom_call.1} parent=1 // loop_pre_header
      _
    $region3: #{tpu_custom_call.1} parent=1 // loop_header
      %s23 = sphi 0, %s27
      %p24 = scmp.ge.s32.totalorder %s23, 4
      %s30 = sphi 0, %s49
      %s31 = sphi 0, %s45
      %s32 = sphi 0, %s41
      %s33 = sphi 0, %s30
      %s34 = sphi 0, %s31
      %s35 = sphi 0, %s32
      %s36 = sphi 0, %s33
      %s37 = sphi 0, %s34
      %s38 = sphi 0, %s35
      %s54 = sphi 0, %s56
      %s57 = sphi 0, %s54
      %s58 = sphi 0, %s57
      %s74 = sphi 0, %s58
      %s80 = sphi 0, %s82
      %s83 = sphi 0, %s80
      %s84 = sphi 0, %s83
      %s100 = sphi 0, %s84
      %s106 = sphi 0, %s108
      %s109 = sphi 0, %s106
      %s110 = sphi 0, %s109
      %s126 = sphi 0, %s110
      %s132 = sphi 0, %s134
      %s135 = sphi 0, %s132
      %s136 = sphi 0, %s135
      %s152 = sphi 0, %s136
      %s158 = sphi 0, %s160
      %s161 = sphi 0, %s158
      %s162 = sphi 0, %s161
      %s178 = sphi 0, %s162
      %s184 = sphi 0, %s186
      %s187 = sphi 0, %s184
      %s188 = sphi 0, %s187
      %s204 = sphi 0, %s188
      %s214 = sphi 0, %s216
      %s217 = sphi 0, %s214
      %s218 = sphi 0, %s217
      %s234 = sphi 0, %s218
    $region4: #{tpu_custom_call.1} parent=1 // loop_header_branch
      %26 = sbr.rel (%p24) target = $region8
    $region5: #{tpu_custom_call.1} parent=1 // loop_body
      %s28 = ssub.s32 %s23, 1
      %s29 = ssub.s32 %s23, 2
      %s39 = sadd.s32 1, %s32
      %p40 = scmp.ge.s32.totalorder %s39, 1
      %s41 = scalar_select %p40, 0, %s39
      %s42 = sadd.s32 1, %s31
      %s43 = scalar_select %p40, %s42, %s31
      %p44 = scmp.ge.s32.totalorder %s43, 1
      %s45 = scalar_select %p44, 0, %s43
      %s46 = sadd.s32 1, %s30
      %s47 = scalar_select %p44, %s46, %s30
      %p48 = scmp.ge.s32.totalorder %s47, 2
      %s49 = scalar_select %p48, 0, %s47
      %s50 = ssub.s32 %s30, %s49
      %s51 = ssub.s32 %s32, %s41
      %s52 = sor.u32 %s50, %s51
      %p53 = scmp.eq.s32.totalorder %s52, 0
      %s55 = sadd.s32 %s54, 1
      %s56 = scalar_select %p53, %s54, %s55
      %p59 = pneg %p53
      %p60 = scmp.eq.s32.totalorder %s23, 1
      %p61 = por %p59, %p60
      %p62 = scmp.ne.s32.totalorder %s54, %s57
      %p63 = scmp.eq.s32.totalorder %s23, 0
      %p64 = por %p62, %p63
      %p65 = scmp.ne.s32.totalorder %s54, %s57
      %p66 = scmp.eq.s32.totalorder %s28, 1
      %p67 = por %p65, %p66
      %p68 = scmp.ne.s32.totalorder %s57, %s58
      %p69 = scmp.eq.s32.totalorder %s28, 0
      %p70 = por %p68, %p69
      %p71 = scmp.ne.s32.totalorder %s57, %s58
      %p72 = scmp.eq.s32.totalorder %s29, 1
      %p73 = por %p71, %p72
      %p75 = scmp.ne.s32.totalorder %s58, %s74
      %p76 = scmp.eq.s32.totalorder %s29, 0
      %p77 = por %p75, %p76
      %s78 = ssub.s32 %s30, %s49
      %p79 = scmp.eq.s32.totalorder %s78, 0
      %s81 = sadd.s32 %s80, 1
      %s82 = scalar_select %p79, %s80, %s81
      %p85 = pneg %p79
      %p86 = scmp.eq.s32.totalorder %s23, 1
      %p87 = por %p85, %p86
      %p88 = scmp.ne.s32.totalorder %s80, %s83
      %p89 = scmp.eq.s32.totalorder %s23, 0
      %p90 = por %p88, %p89
      %p91 = scmp.ne.s32.totalorder %s80, %s83
      %p92 = scmp.eq.s32.totalorder %s28, 1
      %p93 = por %p91, %p92
      %p94 = scmp.ne.s32.totalorder %s83, %s84
      %p95 = scmp.eq.s32.totalorder %s28, 0
      %p96 = por %p94, %p95
      %p97 = scmp.ne.s32.totalorder %s83, %s84
      %p98 = scmp.eq.s32.totalorder %s29, 1
      %p99 = por %p97, %p98
      %p101 = scmp.ne.s32.totalorder %s84, %s100
      %p102 = scmp.eq.s32.totalorder %s29, 0
      %p103 = por %p101, %p102
      %s104 = ssub.s32 %s30, %s49
      %p105 = scmp.eq.s32.totalorder %s104, 0
      %s107 = sadd.s32 %s106, 1
      %s108 = scalar_select %p105, %s106, %s107
      %p111 = pneg %p105
      %p112 = scmp.eq.s32.totalorder %s23, 1
      %p113 = por %p111, %p112
      %p114 = scmp.ne.s32.totalorder %s106, %s109
      %p115 = scmp.eq.s32.totalorder %s23, 0
      %p116 = por %p114, %p115
      %p117 = scmp.ne.s32.totalorder %s106, %s109
      %p118 = scmp.eq.s32.totalorder %s28, 1
      %p119 = por %p117, %p118
      %p120 = scmp.ne.s32.totalorder %s109, %s110
      %p121 = scmp.eq.s32.totalorder %s28, 0
      %p122 = por %p120, %p121
      %p123 = scmp.ne.s32.totalorder %s109, %s110
      %p124 = scmp.eq.s32.totalorder %s29, 1
      %p125 = por %p123, %p124
      %p127 = scmp.ne.s32.totalorder %s110, %s126
      %p128 = scmp.eq.s32.totalorder %s29, 0
      %p129 = por %p127, %p128
      %s130 = ssub.s32 %s31, %s45
      %p131 = scmp.eq.s32.totalorder %s130, 0
      %s133 = sadd.s32 %s132, 1
      %s134 = scalar_select %p131, %s132, %s133
      %p137 = pneg %p131
      %p138 = scmp.eq.s32.totalorder %s23, 1
      %p139 = por %p137, %p138
      %p140 = scmp.ne.s32.totalorder %s132, %s135
      %p141 = scmp.eq.s32.totalorder %s23, 0
      %p142 = por %p140, %p141
      %p143 = scmp.ne.s32.totalorder %s132, %s135
      %p144 = scmp.eq.s32.totalorder %s28, 1
      %p145 = por %p143, %p144
      %p146 = scmp.ne.s32.totalorder %s135, %s136
      %p147 = scmp.eq.s32.totalorder %s28, 0
      %p148 = por %p146, %p147
      %p149 = scmp.ne.s32.totalorder %s135, %s136
      %p150 = scmp.eq.s32.totalorder %s29, 1
      %p151 = por %p149, %p150
      %p153 = scmp.ne.s32.totalorder %s136, %s152
      %p154 = scmp.eq.s32.totalorder %s29, 0
      %p155 = por %p153, %p154
      %s156 = ssub.s32 %s31, %s45
      %p157 = scmp.eq.s32.totalorder %s156, 0
      %s159 = sadd.s32 %s158, 1
      %s160 = scalar_select %p157, %s158, %s159
      %p163 = pneg %p157
      %p164 = scmp.eq.s32.totalorder %s23, 1
      %p165 = por %p163, %p164
      %p166 = scmp.ne.s32.totalorder %s158, %s161
      %p167 = scmp.eq.s32.totalorder %s23, 0
      %p168 = por %p166, %p167
      %p169 = scmp.ne.s32.totalorder %s158, %s161
      %p170 = scmp.eq.s32.totalorder %s28, 1
      %p171 = por %p169, %p170
      %p172 = scmp.ne.s32.totalorder %s161, %s162
      %p173 = scmp.eq.s32.totalorder %s28, 0
      %p174 = por %p172, %p173
      %p175 = scmp.ne.s32.totalorder %s161, %s162
      %p176 = scmp.eq.s32.totalorder %s29, 1
      %p177 = por %p175, %p176
      %p179 = scmp.ne.s32.totalorder %s162, %s178
      %p180 = scmp.eq.s32.totalorder %s29, 0
      %p181 = por %p179, %p180
      %s182 = ssub.s32 %s31, %s45
      %p183 = scmp.eq.s32.totalorder %s182, 0
      %s185 = sadd.s32 %s184, 1
      %s186 = scalar_select %p183, %s184, %s185
      %p189 = pneg %p183
      %p190 = scmp.eq.s32.totalorder %s23, 1
      %p191 = por %p189, %p190
      %p192 = scmp.ne.s32.totalorder %s184, %s187
      %p193 = scmp.eq.s32.totalorder %s23, 0
      %p194 = por %p192, %p193
      %p195 = scmp.ne.s32.totalorder %s184, %s187
      %p196 = scmp.eq.s32.totalorder %s28, 1
      %p197 = por %p195, %p196
      %p198 = scmp.ne.s32.totalorder %s187, %s188
      %p199 = scmp.eq.s32.totalorder %s28, 0
      %p200 = por %p198, %p199
      %p201 = scmp.ne.s32.totalorder %s187, %s188
      %p202 = scmp.eq.s32.totalorder %s29, 1
      %p203 = por %p201, %p202
      %p205 = scmp.ne.s32.totalorder %s188, %s204
      %p206 = scmp.eq.s32.totalorder %s29, 0
      %p207 = por %p205, %p206
      %s208 = ssub.s32 %s30, %s49
      %s209 = ssub.s32 %s32, %s41
      %s210 = sor.u32 %s208, %s209
      %s211 = ssub.s32 %s31, %s45
      %s212 = sor.u32 %s210, %s211
      %p213 = scmp.eq.s32.totalorder %s212, 0
      %s215 = sadd.s32 %s214, 1
      %s216 = scalar_select %p213, %s214, %s215
      %p219 = pneg %p213
      %p220 = scmp.eq.s32.totalorder %s23, 1
      %p221 = por %p219, %p220
      %p222 = scmp.ne.s32.totalorder %s214, %s217
      %p223 = scmp.eq.s32.totalorder %s23, 0
      %p224 = por %p222, %p223
      %p225 = scmp.ne.s32.totalorder %s214, %s217
      %p226 = scmp.eq.s32.totalorder %s28, 1
      %p227 = por %p225, %p226
      %p228 = scmp.ne.s32.totalorder %s217, %s218
      %p229 = scmp.eq.s32.totalorder %s28, 0
      %p230 = por %p228, %p229
      %p231 = scmp.ne.s32.totalorder %s217, %s218
      %p232 = scmp.eq.s32.totalorder %s29, 1
      %p233 = por %p231, %p232
      %p235 = scmp.ne.s32.totalorder %s218, %s234
      %p236 = scmp.eq.s32.totalorder %s29, 0
      %p237 = por %p235, %p236
      %p238 = scmp.le.s32.totalorder 1, %s23
      %p239 = scmp.lt.s32.totalorder %s23, 3
      %p240 = pnand %p238, %p239
      %p241 = pneg %p240
      // Predicated region
      $region9: #{tpu_custom_call.1} parent=5 // pred_check
        _
      $region10: #{tpu_custom_call.1} parent=5 // pred_check_branch
        %243 = sbr.rel (%p240) target = $region12
      $region11: #{tpu_custom_call.1} parent=5 // pred_region
        %s244 = ssub.s32 %s23, 1
        // Predicated region
        $region13: #{tpu_custom_call.1} parent=11 // pred_check
          %p245 = pneg %p148
        $region14: #{tpu_custom_call.1} parent=11 // pred_check_branch
          %247 = sbr.rel (%p245) target = $region16
        $region15: #{tpu_custom_call.1} parent=11 // pred_region
          %s249 = ssub.s32 512, 512
          %250 = vsyncadd [#allocation11], %s249
          %s251 = smul.addr %s34, 4
          %s252 = smul.addr %s251, 128
          %s253 = scalar_lea.hbm %s3, %s252
          %s254 = sshll.u32 [#allocation10], 4
          %s255 = int_to_ptr.vmem [resolvable:$true] %s254
          %260 = dma.hbm_to_vmem [thread:$0]  %s253, 512, %s255, [#allocation11], 128, 128, 8
        $region16: #{tpu_custom_call.1} parent=11 // pred_fallthru
          _
        // Predicated region
        $region17: #{tpu_custom_call.1} parent=11 // pred_check
          %p261 = pneg %p174
        $region18: #{tpu_custom_call.1} parent=11 // pred_check_branch
          %263 = sbr.rel (%p261) target = $region20
        $region19: #{tpu_custom_call.1} parent=11 // pred_region
          %s265 = ssub.s32 512, 512
          %266 = vsyncadd [#allocation11], %s265
          %s267 = smul.addr %s34, 4
          %s268 = smul.addr %s267, 128
          %s269 = scalar_lea.hbm %s4, %s268
          %s270 = sshll.u32 [#allocation12], 4
          %s271 = int_to_ptr.vmem [resolvable:$true] %s270
          %276 = dma.hbm_to_vmem [thread:$0]  %s269, 512, %s271, [#allocation11], 128, 128, 8
        $region20: #{tpu_custom_call.1} parent=11 // pred_fallthru
          _
        // Predicated region
        $region21: #{tpu_custom_call.1} parent=11 // pred_check
          %p277 = pneg %p200
        $region22: #{tpu_custom_call.1} parent=11 // pred_check_branch
          %279 = sbr.rel (%p277) target = $region24
        $region23: #{tpu_custom_call.1} parent=11 // pred_region
          %s281 = ssub.s32 512, 512
          %282 = vsyncadd [#allocation14], %s281
          %s283 = smul.addr %s34, 4
          %s284 = smul.addr %s283, 128
          %s285 = scalar_lea.hbm %s5, %s284
          %s286 = sshll.u32 [#allocation13], 4
          %s287 = int_to_ptr.vmem [resolvable:$true] %s286
          %292 = dma.hbm_to_vmem [thread:$0]  %s285, 512, %s287, [#allocation14], 128, 128, 8
        $region24: #{tpu_custom_call.1} parent=11 // pred_fallthru
          _
      $region12: #{tpu_custom_call.1} parent=5 // pred_fallthru
        _
      %p293 = scmp.lt.s32.totalorder %s23, 2
      // Predicated region
      $region25: #{tpu_custom_call.1} parent=5 // pred_check
        %p294 = pneg %p293
      $region26: #{tpu_custom_call.1} parent=5 // pred_check_branch
        %296 = sbr.rel (%p294) target = $region28
      $region27: #{tpu_custom_call.1} parent=5 // pred_region
        // Predicated region
        $region29: #{tpu_custom_call.1} parent=27 // pred_check
          %p297 = pneg %p64
        $region30: #{tpu_custom_call.1} parent=27 // pred_check_branch
          %299 = sbr.rel (%p297) target = $region32
        $region31: #{tpu_custom_call.1} parent=27 // pred_region
          %s300 = sand.u32 %s54, 1
          %s301 = scalar_lea.sflag [#allocation5], %s300
          %s302 = sand.u32 %s54, 1
          %s303 = smul.addr %s302, 8
          %s304 = scalar_lea.vmem [#allocation4], %s303
          %s306 = ssub.s32 128, 128
          %307 = vsyncadd %s301, %s306
          %s308 = sadd.s32 %s32, %s30
          %s309 = smul.addr %s308, 128
          %s310 = scalar_lea.hbm %s0, %s309
          %s312 = sshll.u32 %s304, 4
          %s313 = int_to_ptr.vmem [resolvable:$true] %s312
          %315 = dma.hbm_to_vmem [thread:$0]  %s310, 128, %s313, %s301
        $region32: #{tpu_custom_call.1} parent=27 // pred_fallthru
          _
        // Predicated region
        $region33: #{tpu_custom_call.1} parent=27 // pred_check
          %p316 = pneg %p90
        $region34: #{tpu_custom_call.1} parent=27 // pred_check_branch
          %318 = sbr.rel (%p316) target = $region36
        $region35: #{tpu_custom_call.1} parent=27 // pred_region
          %s319 = sand.u32 %s23, 1
          %s320 = scalar_lea.sflag [#allocation8], %s319
          %s321 = sand.u32 %s80, 1
          %s322 = smul.addr %s321, 8
          %s323 = scalar_lea.vmem [#allocation7], %s322
          %s325 = ssub.s32 128, 128
          %326 = vsyncadd %s320, %s325
          %s327 = smul.addr %s30, 128
          %s328 = scalar_lea.hbm %s1, %s327
          %s330 = sshll.u32 %s323, 4
          %s331 = int_to_ptr.vmem [resolvable:$true] %s330
          %333 = dma.hbm_to_vmem [thread:$0]  %s328, 128, %s331, %s320
        $region36: #{tpu_custom_call.1} parent=27 // pred_fallthru
          _
        // Predicated region
        $region37: #{tpu_custom_call.1} parent=27 // pred_check
          %p334 = pneg %p116
        $region38: #{tpu_custom_call.1} parent=27 // pred_check_branch
          %336 = sbr.rel (%p334) target = $region40
        $region39: #{tpu_custom_call.1} parent=27 // pred_region
          %s337 = sand.u32 %s23, 1
          %s338 = scalar_lea.sflag [#allocation8], %s337
          %s339 = sand.u32 %s106, 1
          %s340 = smul.addr %s339, 8
          %s341 = scalar_lea.vmem [#allocation9], %s340
          %s343 = ssub.s32 128, 128
          %344 = vsyncadd %s338, %s343
          %s345 = smul.addr %s30, 128
          %s346 = scalar_lea.hbm %s2, %s345
          %s348 = sshll.u32 %s341, 4
          %s349 = int_to_ptr.vmem [resolvable:$true] %s348
          %351 = dma.hbm_to_vmem [thread:$0]  %s346, 128, %s349, %s338
        $region40: #{tpu_custom_call.1} parent=27 // pred_fallthru
          _
      $region28: #{tpu_custom_call.1} parent=5 // pred_fallthru
        _
      %p352 = scmp.le.s32.totalorder 1, %s23
      %p353 = scmp.lt.s32.totalorder %s23, 3
      %p354 = pnand %p352, %p353
      %p355 = pneg %p354
      // Predicated region
      $region41: #{tpu_custom_call.1} parent=5 // pred_check
        _
      $region42: #{tpu_custom_call.1} parent=5 // pred_check_branch
        %357 = sbr.rel (%p354) target = $region44
      $region43: #{tpu_custom_call.1} parent=5 // pred_region
        %s358 = ssub.s32 %s23, 1
        %s359 = sand.u32 %s57, 1
        %s360 = scalar_lea.sflag [#allocation5], %s359
        %s361 = sand.u32 %s57, 1
        %s362 = smul.addr %s361, 8
        %s363 = scalar_lea.vmem [#allocation4], %s362
        // Predicated region
        $region45: #{tpu_custom_call.1} parent=43 // pred_check
          %p364 = pneg %p70
        $region46: #{tpu_custom_call.1} parent=43 // pred_check_branch
          %366 = sbr.rel (%p364) target = $region48
        $region47: #{tpu_custom_call.1} parent=43 // pred_region
          %367 = dma.done %s360, 128
        $region48: #{tpu_custom_call.1} parent=43 // pred_fallthru
          _
        %s368 = sand.u32 %s28, 1
        %s369 = scalar_lea.sflag [#allocation8], %s368
        %s370 = sand.u32 %s83, 1
        %s371 = smul.addr %s370, 8
        %s372 = scalar_lea.vmem [#allocation7], %s371
        // Predicated region
        $region49: #{tpu_custom_call.1} parent=43 // pred_check
          %p373 = pneg %p96
        $region50: #{tpu_custom_call.1} parent=43 // pred_check_branch
          %375 = sbr.rel (%p373) target = $region52
        $region51: #{tpu_custom_call.1} parent=43 // pred_region
          %376 = dma.done %s369, 128
        $region52: #{tpu_custom_call.1} parent=43 // pred_fallthru
          _
        %s377 = sand.u32 %s28, 1
        %s378 = scalar_lea.sflag [#allocation8], %s377
        %s379 = sand.u32 %s109, 1
        %s380 = smul.addr %s379, 8
        %s381 = scalar_lea.vmem [#allocation9], %s380
        // Predicated region
        $region53: #{tpu_custom_call.1} parent=43 // pred_check
          %p382 = pneg %p122
        $region54: #{tpu_custom_call.1} parent=43 // pred_check_branch
          %384 = sbr.rel (%p382) target = $region56
        $region55: #{tpu_custom_call.1} parent=43 // pred_region
          %385 = dma.done %s378, 128
        $region56: #{tpu_custom_call.1} parent=43 // pred_fallthru
          _
        // Predicated region
        $region57: #{tpu_custom_call.1} parent=43 // pred_check
          %p386 = pneg %p148
        $region58: #{tpu_custom_call.1} parent=43 // pred_check_branch
          %388 = sbr.rel (%p386) target = $region60
        $region59: #{tpu_custom_call.1} parent=43 // pred_region
          %389 = dma.done [#allocation11], 512
        $region60: #{tpu_custom_call.1} parent=43 // pred_fallthru
          _
        // Predicated region
        $region61: #{tpu_custom_call.1} parent=43 // pred_check
          %p390 = pneg %p174
        $region62: #{tpu_custom_call.1} parent=43 // pred_check_branch
          %392 = sbr.rel (%p390) target = $region64
        $region63: #{tpu_custom_call.1} parent=43 // pred_region
          %393 = dma.done [#allocation11], 512
        $region64: #{tpu_custom_call.1} parent=43 // pred_fallthru
          _
        // Predicated region
        $region65: #{tpu_custom_call.1} parent=43 // pred_check
          %p394 = pneg %p200
        $region66: #{tpu_custom_call.1} parent=43 // pred_check_branch
          %396 = sbr.rel (%p394) target = $region68
        $region67: #{tpu_custom_call.1} parent=43 // pred_region
          %397 = dma.done [#allocation14], 512
        $region68: #{tpu_custom_call.1} parent=43 // pred_fallthru
          _
        %s398 = sand.u32 %s57, 1
        %s399 = scalar_lea.sflag [#allocation5], %s398
        %s400 = sand.u32 %s57, 1
        %s401 = smul.addr %s400, 8
        %s402 = scalar_lea.vmem [#allocation4], %s401
        %p403 = pneg %p70
        %p404 = pneg %p67
        %s405 = sand.u32 %s28, 1
        %s406 = scalar_lea.sflag [#allocation8], %s405
        %s407 = sand.u32 %s83, 1
        %s408 = smul.addr %s407, 8
        %s409 = scalar_lea.vmem [#allocation7], %s408
        %p410 = pneg %p96
        %p411 = pneg %p93
        %s412 = sand.u32 %s28, 1
        %s413 = scalar_lea.sflag [#allocation8], %s412
        %s414 = sand.u32 %s109, 1
        %s415 = smul.addr %s414, 8
        %s416 = scalar_lea.vmem [#allocation9], %s415
        %p417 = pneg %p122
        %p418 = pneg %p119
        %p419 = pneg %p148
        %p420 = pneg %p145
        %p421 = pneg %p174
        %p422 = pneg %p171
        %p423 = pneg %p200
        %p424 = pneg %p197
        %p425 = pneg %p230
        %p426 = pneg %p227
        %s427 = sand.u32 %s217, 1
        %s428 = scalar_lea.sflag [#allocation6], %s427
        %s429 = sand.u32 %s217, 1
        %s430 = smul.addr %s429, 8
        %s431 = scalar_lea.vmem [#allocation15], %s430
        %p432 = scmp.eq.s32.totalorder %s35, 0
        // Predicated region
        $region69: #{tpu_custom_call.1} parent=43 // pred_check
          %p433 = pneg %p432
        $region70: #{tpu_custom_call.1} parent=43 // pred_check_branch
          %435 = sbr.rel (%p433) target = $region72
        $region71: #{tpu_custom_call.1} parent=43 // pred_region
          %v436 = vld [vmem:[%s372] sm:$0xff]
          %v437 = vld [vmem:[%s381] sm:$0xff]
          %v438 = vld [vmem:[#allocation12] sm:$0xff]
          %v439 = vld [vmem:[#allocation12 + $0x8] sm:$0xff]
          %v440 = vld [vmem:[#allocation12 + $0x10] sm:$0xff]
          %v441 = vld [vmem:[#allocation12 + $0x18] sm:$0xff]
          %vm442 = vcmask 261120
          %v444 = vsel %vm442, %v436, 0
          %446 = vmatprep.subr.mxu0 0.0
          %447 = vmatpush1.msra.mxu0 %v438
          %448 = vmatprep.subr.mxu0 0.0
          %449 = vmatpush1.msra.mxu0 %v439
          %450 = vmatprep.subr.mxu0 0.0
          %451 = vmatpush1.msra.mxu0 %v440
          %452 = vmatprep.subr.mxu0 0.0
          %453 = vmatpush1.msra.mxu0 %v441
          %454 = vmatprep.subr.mxu0 0.0
          %455 = vmatpush1.msra.mxu0 0.0
          %456 = vmatprep.subr.mxu0 0.0
          %457 = vmatpush1.msra.mxu0 0.0
          %458 = vmatprep.subr.mxu0 0.0
          %459 = vmatpush1.msra.mxu0 0.0
          %460 = vmatprep.subr.mxu0 0.0
          %461 = vmatpush1.msra.mxu0 0.0
          %462 = vmatprep.subr.mxu0 0.0
          %463 = vmatpush1.msra.mxu0 0.0
          %464 = vmatprep.subr.mxu0 0.0
          %465 = vmatpush1.msra.mxu0 0.0
          %466 = vmatprep.subr.mxu0 0.0
          %467 = vmatpush1.msra.mxu0 0.0
          %468 = vmatprep.subr.mxu0 0.0
          %469 = vmatpush1.msra.mxu0 0.0
          %470 = vmatprep.subr.mxu0 0.0
          %471 = vmatpush1.msra.mxu0 0.0
          %472 = vmatprep.subr.mxu0 0.0
          %473 = vmatpush1.msra.mxu0 0.0
          %474 = vmatprep.subr.mxu0 0.0
          %475 = vmatpush1.msra.mxu0 0.0
          %476 = vmatprep.subr.mxu0 0.0
          %477 = vmatpush1.msra.mxu0 0.0
          %478 = vmatprep.subr.mxu0 0.0
          %479 = vmatpush1.msra.mxu0 0.0
          %480 = vmatprep.subr.mxu0 0.0
          %481 = vmatpush1.msra.mxu0 0.0
          %482 = vmatprep.subr.mxu0 0.0
          %483 = vmatpush1.msra.mxu0 0.0
          %484 = vmatprep.subr.mxu0 0.0
          %485 = vmatpush1.msra.mxu0 0.0
          %486 = vmatprep.subr.mxu0 0.0
          %487 = vmatpush1.msra.mxu0 0.0
          %488 = vmatprep.subr.mxu0 0.0
          %489 = vmatpush1.msra.mxu0 0.0
          %490 = vmatprep.subr.mxu0 0.0
          %491 = vmatpush1.msra.mxu0 0.0
          %492 = vmatprep.subr.mxu0 0.0
          %493 = vmatpush1.msra.mxu0 0.0
          %494 = vmatprep.subr.mxu0 0.0
          %495 = vmatpush1.msra.mxu0 0.0
          %496 = vmatprep.subr.mxu0 0.0
          %497 = vmatpush1.msra.mxu0 0.0
          %498 = vmatprep.subr.mxu0 0.0
          %499 = vmatpush1.msra.mxu0 0.0
          %500 = vmatprep.subr.mxu0 0.0
          %501 = vmatpush1.msra.mxu0 0.0
          %502 = vmatprep.subr.mxu0 0.0
          %503 = vmatpush1.msra.mxu0 0.0
          %504 = vmatprep.subr.mxu0 0.0
          %505 = vmatpush1.msra.mxu0 0.0
          %506 = vmatprep.subr.mxu0 0.0
          %507 = vmatpush1.msra.mxu0 0.0
          %508 = vmatprep.subr.mxu0 0.0
          %509 = vmatpush1.msra.mxu0 0.0
          %510 = vmatprep.mubr.f32.mxu0 0.0
          %511 = vmatmul.mubr.f32.gmra.mrb[0].mxu0 %v444
          %v512 = vpop.f32.mrb[0].mxu0
          %v513 = vadd.f32 0.0, %v512
          %v514 = vpop.f32.mrb[0].mxu0
          %515 = vdwg.mxu0
          %516 = vst.msk [vmem:[#allocation2] sm:$0xff] %vm442, %v513
          %v517 = vld [vmem:[#allocation13] sm:$0xff]
          %v518 = vld [vmem:[#allocation13 + $0x8] sm:$0xff]
          %v519 = vld [vmem:[#allocation13 + $0x10] sm:$0xff]
          %v520 = vld [vmem:[#allocation13 + $0x18] sm:$0xff]
          %v522 = vsel %vm442, %v437, 0
          %524 = vmatprep.subr.mxu0 0.0
          %525 = vmatpush1.msra.mxu0 %v517
          %526 = vmatprep.subr.mxu0 0.0
          %527 = vmatpush1.msra.mxu0 %v518
          %528 = vmatprep.subr.mxu0 0.0
          %529 = vmatpush1.msra.mxu0 %v519
          %530 = vmatprep.subr.mxu0 0.0
          %531 = vmatpush1.msra.mxu0 %v520
          %532 = vmatprep.subr.mxu0 0.0
          %533 = vmatpush1.msra.mxu0 0.0
          %534 = vmatprep.subr.mxu0 0.0
          %535 = vmatpush1.msra.mxu0 0.0
          %536 = vmatprep.subr.mxu0 0.0
          %537 = vmatpush1.msra.mxu0 0.0
          %538 = vmatprep.subr.mxu0 0.0
          %539 = vmatpush1.msra.mxu0 0.0
          %540 = vmatprep.subr.mxu0 0.0
          %541 = vmatpush1.msra.mxu0 0.0
          %542 = vmatprep.subr.mxu0 0.0
          %543 = vmatpush1.msra.mxu0 0.0
          %544 = vmatprep.subr.mxu0 0.0
          %545 = vmatpush1.msra.mxu0 0.0
          %546 = vmatprep.subr.mxu0 0.0
          %547 = vmatpush1.msra.mxu0 0.0
          %548 = vmatprep.subr.mxu0 0.0
          %549 = vmatpush1.msra.mxu0 0.0
          %550 = vmatprep.subr.mxu0 0.0
          %551 = vmatpush1.msra.mxu0 0.0
          %552 = vmatprep.subr.mxu0 0.0
          %553 = vmatpush1.msra.mxu0 0.0
          %554 = vmatprep.subr.mxu0 0.0
          %555 = vmatpush1.msra.mxu0 0.0
          %556 = vmatprep.subr.mxu0 0.0
          %557 = vmatpush1.msra.mxu0 0.0
          %558 = vmatprep.subr.mxu0 0.0
          %559 = vmatpush1.msra.mxu0 0.0
          %560 = vmatprep.subr.mxu0 0.0
          %561 = vmatpush1.msra.mxu0 0.0
          %562 = vmatprep.subr.mxu0 0.0
          %563 = vmatpush1.msra.mxu0 0.0
          %564 = vmatprep.subr.mxu0 0.0
          %565 = vmatpush1.msra.mxu0 0.0
          %566 = vmatprep.subr.mxu0 0.0
          %567 = vmatpush1.msra.mxu0 0.0
          %568 = vmatprep.subr.mxu0 0.0
          %569 = vmatpush1.msra.mxu0 0.0
          %570 = vmatprep.subr.mxu0 0.0
          %571 = vmatpush1.msra.mxu0 0.0
          %572 = vmatprep.subr.mxu0 0.0
          %573 = vmatpush1.msra.mxu0 0.0
          %574 = vmatprep.subr.mxu0 0.0
          %575 = vmatpush1.msra.mxu0 0.0
          %576 = vmatprep.subr.mxu0 0.0
          %577 = vmatpush1.msra.mxu0 0.0
          %578 = vmatprep.subr.mxu0 0.0
          %579 = vmatpush1.msra.mxu0 0.0
          %580 = vmatprep.subr.mxu0 0.0
          %581 = vmatpush1.msra.mxu0 0.0
          %582 = vmatprep.subr.mxu0 0.0
          %583 = vmatpush1.msra.mxu0 0.0
          %584 = vmatprep.subr.mxu0 0.0
          %585 = vmatpush1.msra.mxu0 0.0
          %586 = vmatprep.subr.mxu0 0.0
          %587 = vmatpush1.msra.mxu0 0.0
          %588 = vmatprep.mubr.f32.mxu0 0.0
          %589 = vmatmul.mubr.f32.gmra.mrb[0].mxu0 %v522
          %v590 = vpop.f32.mrb[0].mxu0
          %v591 = vadd.f32 0.0, %v590
          %v592 = vpop.f32.mrb[0].mxu0
          %593 = vdwg.mxu0
          %594 = vst.msk [vmem:[#allocation3] sm:$0xff] %vm442, %v591
        $region72: #{tpu_custom_call.1} parent=43 // pred_fallthru
          _
        %v595 = vld [vmem:[%s363] sm:$0xff]
        %v596 = vld [vmem:[#allocation10] sm:$0xff]
        %v597 = vld [vmem:[#allocation10 + $0x8] sm:$0xff]
        %v598 = vld [vmem:[#allocation10 + $0x10] sm:$0xff]
        %v599 = vld [vmem:[#allocation10 + $0x18] sm:$0xff]
        %vm600 = vcmask 261120
        %v602 = vsel %vm600, %v595, 0
        %604 = vmatprep.subr.mxu0 0.0
        %605 = vmatpush1.msra.mxu0 %v596
        %606 = vmatprep.subr.mxu0 0.0
        %607 = vmatpush1.msra.mxu0 %v597
        %608 = vmatprep.subr.mxu0 0.0
        %609 = vmatpush1.msra.mxu0 %v598
        %610 = vmatprep.subr.mxu0 0.0
        %611 = vmatpush1.msra.mxu0 %v599
        %612 = vmatprep.subr.mxu0 0.0
        %613 = vmatpush1.msra.mxu0 0.0
        %614 = vmatprep.subr.mxu0 0.0
        %615 = vmatpush1.msra.mxu0 0.0
        %616 = vmatprep.subr.mxu0 0.0
        %617 = vmatpush1.msra.mxu0 0.0
        %618 = vmatprep.subr.mxu0 0.0
        %619 = vmatpush1.msra.mxu0 0.0
        %620 = vmatprep.subr.mxu0 0.0
        %621 = vmatpush1.msra.mxu0 0.0
        %622 = vmatprep.subr.mxu0 0.0
        %623 = vmatpush1.msra.mxu0 0.0
        %624 = vmatprep.subr.mxu0 0.0
        %625 = vmatpush1.msra.mxu0 0.0
        %626 = vmatprep.subr.mxu0 0.0
        %627 = vmatpush1.msra.mxu0 0.0
        %628 = vmatprep.subr.mxu0 0.0
        %629 = vmatpush1.msra.mxu0 0.0
        %630 = vmatprep.subr.mxu0 0.0
        %631 = vmatpush1.msra.mxu0 0.0
        %632 = vmatprep.subr.mxu0 0.0
        %633 = vmatpush1.msra.mxu0 0.0
        %634 = vmatprep.subr.mxu0 0.0
        %635 = vmatpush1.msra.mxu0 0.0
        %636 = vmatprep.subr.mxu0 0.0
        %637 = vmatpush1.msra.mxu0 0.0
        %638 = vmatprep.subr.mxu0 0.0
        %639 = vmatpush1.msra.mxu0 0.0
        %640 = vmatprep.subr.mxu0 0.0
        %641 = vmatpush1.msra.mxu0 0.0
        %642 = vmatprep.subr.mxu0 0.0
        %643 = vmatpush1.msra.mxu0 0.0
        %644 = vmatprep.subr.mxu0 0.0
        %645 = vmatpush1.msra.mxu0 0.0
        %646 = vmatprep.subr.mxu0 0.0
        %647 = vmatpush1.msra.mxu0 0.0
        %648 = vmatprep.subr.mxu0 0.0
        %649 = vmatpush1.msra.mxu0 0.0
        %650 = vmatprep.subr.mxu0 0.0
        %651 = vmatpush1.msra.mxu0 0.0
        %652 = vmatprep.subr.mxu0 0.0
        %653 = vmatpush1.msra.mxu0 0.0
        %654 = vmatprep.subr.mxu0 0.0
        %655 = vmatpush1.msra.mxu0 0.0
        %656 = vmatprep.subr.mxu0 0.0
        %657 = vmatpush1.msra.mxu0 0.0
        %658 = vmatprep.subr.mxu0 0.0
        %659 = vmatpush1.msra.mxu0 0.0
        %660 = vmatprep.subr.mxu0 0.0
        %661 = vmatpush1.msra.mxu0 0.0
        %662 = vmatprep.subr.mxu0 0.0
        %663 = vmatpush1.msra.mxu0 0.0
        %664 = vmatprep.subr.mxu0 0.0
        %665 = vmatpush1.msra.mxu0 0.0
        %666 = vmatprep.subr.mxu0 0.0
        %667 = vmatpush1.msra.mxu0 0.0
        %668 = vmatprep.mubr.f32.mxu0 0.0
        %669 = vmatmul.mubr.f32.gmra.mrb[0].mxu0 %v602
        %v670 = vpop.f32.mrb[0].mxu0
        %v671 = vadd.f32 0.0, %v670
        %v672 = vpop.f32.mrb[0].mxu0
        %673 = vdwg.mxu0
        %v674 = vld [vmem:[#allocation2] sm:$0xff]
        %v675 = vld [vmem:[#allocation3] sm:$0xff]
        %vm676 = vcmask 64512
        %v678 = vsel %vm676, %v671, 0
        %v681 = vsel %vm676, %v674, 0
        %683 = vmatprep.subr.mxu0 0.0
        %684 = vmatpush1.xpose.msra.mxu0 %v681
        %685 = vmatprep.subr.mxu0 0.0
        %686 = vmatpush1.xpose.msra.mxu0 0.0
        %687 = vmatprep.subr.mxu0 0.0
        %688 = vmatpush1.xpose.msra.mxu0 0.0
        %689 = vmatprep.subr.mxu0 0.0
        %690 = vmatpush1.xpose.msra.mxu0 0.0
        %691 = vmatprep.subr.mxu0 0.0
        %692 = vmatpush1.xpose.msra.mxu0 0.0
        %693 = vmatprep.subr.mxu0 0.0
        %694 = vmatpush1.xpose.msra.mxu0 0.0
        %695 = vmatprep.subr.mxu0 0.0
        %696 = vmatpush1.xpose.msra.mxu0 0.0
        %697 = vmatprep.subr.mxu0 0.0
        %698 = vmatpush1.xpose.msra.mxu0 0.0
        %699 = vmatprep.subr.mxu0 0.0
        %700 = vmatpush1.xpose.msra.mxu0 0.0
        %701 = vmatprep.subr.mxu0 0.0
        %702 = vmatpush1.xpose.msra.mxu0 0.0
        %703 = vmatprep.subr.mxu0 0.0
        %704 = vmatpush1.xpose.msra.mxu0 0.0
        %705 = vmatprep.subr.mxu0 0.0
        %706 = vmatpush1.xpose.msra.mxu0 0.0
        %707 = vmatprep.subr.mxu0 0.0
        %708 = vmatpush1.xpose.msra.mxu0 0.0
        %709 = vmatprep.subr.mxu0 0.0
        %710 = vmatpush1.xpose.msra.mxu0 0.0
        %711 = vmatprep.subr.mxu0 0.0
        %712 = vmatpush1.xpose.msra.mxu0 0.0
        %713 = vmatprep.subr.mxu0 0.0
        %714 = vmatpush1.xpose.msra.mxu0 0.0
        %715 = vmatprep.subr.mxu0 0.0
        %716 = vmatpush1.xpose.msra.mxu0 0.0
        %717 = vmatprep.subr.mxu0 0.0
        %718 = vmatpush1.xpose.msra.mxu0 0.0
        %719 = vmatprep.subr.mxu0 0.0
        %720 = vmatpush1.xpose.msra.mxu0 0.0
        %721 = vmatprep.subr.mxu0 0.0
        %722 = vmatpush1.xpose.msra.mxu0 0.0
        %723 = vmatprep.subr.mxu0 0.0
        %724 = vmatpush1.xpose.msra.mxu0 0.0
        %725 = vmatprep.subr.mxu0 0.0
        %726 = vmatpush1.xpose.msra.mxu0 0.0
        %727 = vmatprep.subr.mxu0 0.0
        %728 = vmatpush1.xpose.msra.mxu0 0.0
        %729 = vmatprep.subr.mxu0 0.0
        %730 = vmatpush1.xpose.msra.mxu0 0.0
        %731 = vmatprep.subr.mxu0 0.0
        %732 = vmatpush1.xpose.msra.mxu0 0.0
        %733 = vmatprep.subr.mxu0 0.0
        %734 = vmatpush1.xpose.msra.mxu0 0.0
        %735 = vmatprep.subr.mxu0 0.0
        %736 = vmatpush1.xpose.msra.mxu0 0.0
        %737 = vmatprep.subr.mxu0 0.0
        %738 = vmatpush1.xpose.msra.mxu0 0.0
        %739 = vmatprep.subr.mxu0 0.0
        %740 = vmatpush1.xpose.msra.mxu0 0.0
        %741 = vmatprep.subr.mxu0 0.0
        %742 = vmatpush1.xpose.msra.mxu0 0.0
        %743 = vmatprep.subr.mxu0 0.0
        %744 = vmatpush1.xpose.msra.mxu0 0.0
        %745 = vmatprep.subr.mxu0 0.0
        %746 = vmatpush1.xpose.msra.mxu0 0.0
        %747 = vmatprep.mubr.f32.mxu0 0.0
        %748 = vmatmul.mubr.f32.gmra.mrb[0].mxu0 %v678
        %v749 = vpop.f32.mrb[0].mxu0
        %v750 = vadd.f32 0.0, %v749
        %v751 = vpop.f32.mrb[0].mxu0
        %752 = vdwg.mxu0
        %v753 = vsel %vm676, %v750, -inf
        %754 = vmax.xlane.f32.xlu0 %v753
        %v755 = vpop.xlane.xlu0 %754
        %v756 = vsub.f32 %v750, %v755
        %v757 = vmul.f32 %v756, 1.442695
        %v758 = vpow.pop %v757
        %v759 = vsel %vm676, %v758, 0.0
        %760 = vadd.xlane.f32.xlu0 %v759
        %v761 = vpop.xlane.xlu0 %760
        %v762 = vrcp.pop %v761
        %v763 = vmul.f32 %v758, %v762
        %v765 = vsel %vm676, %v763, 0
        %767 = vmatprep.subr.mxu0 0.0
        %768 = vmatpush1.msra.mxu0 %v675
        %769 = vmatprep.subr.mxu0 0.0
        %770 = vmatpush1.msra.mxu0 0.0
        %771 = vmatprep.subr.mxu0 0.0
        %772 = vmatpush1.msra.mxu0 0.0
        %773 = vmatprep.subr.mxu0 0.0
        %774 = vmatpush1.msra.mxu0 0.0
        %775 = vmatprep.subr.mxu0 0.0
        %776 = vmatpush1.msra.mxu0 0.0
        %777 = vmatprep.subr.mxu0 0.0
        %778 = vmatpush1.msra.mxu0 0.0
        %779 = vmatprep.subr.mxu0 0.0
        %780 = vmatpush1.msra.mxu0 0.0
        %781 = vmatprep.subr.mxu0 0.0
        %782 = vmatpush1.msra.mxu0 0.0
        %783 = vmatprep.subr.mxu0 0.0
        %784 = vmatpush1.msra.mxu0 0.0
        %785 = vmatprep.subr.mxu0 0.0
        %786 = vmatpush1.msra.mxu0 0.0
        %787 = vmatprep.subr.mxu0 0.0
        %788 = vmatpush1.msra.mxu0 0.0
        %789 = vmatprep.subr.mxu0 0.0
        %790 = vmatpush1.msra.mxu0 0.0
        %791 = vmatprep.subr.mxu0 0.0
        %792 = vmatpush1.msra.mxu0 0.0
        %793 = vmatprep.subr.mxu0 0.0
        %794 = vmatpush1.msra.mxu0 0.0
        %795 = vmatprep.subr.mxu0 0.0
        %796 = vmatpush1.msra.mxu0 0.0
        %797 = vmatprep.subr.mxu0 0.0
        %798 = vmatpush1.msra.mxu0 0.0
        %799 = vmatprep.subr.mxu0 0.0
        %800 = vmatpush1.msra.mxu0 0.0
        %801 = vmatprep.subr.mxu0 0.0
        %802 = vmatpush1.msra.mxu0 0.0
        %803 = vmatprep.subr.mxu0 0.0
        %804 = vmatpush1.msra.mxu0 0.0
        %805 = vmatprep.subr.mxu0 0.0
        %806 = vmatpush1.msra.mxu0 0.0
        %807 = vmatprep.subr.mxu0 0.0
        %808 = vmatpush1.msra.mxu0 0.0
        %809 = vmatprep.subr.mxu0 0.0
        %810 = vmatpush1.msra.mxu0 0.0
        %811 = vmatprep.subr.mxu0 0.0
        %812 = vmatpush1.msra.mxu0 0.0
        %813 = vmatprep.subr.mxu0 0.0
        %814 = vmatpush1.msra.mxu0 0.0
        %815 = vmatprep.subr.mxu0 0.0
        %816 = vmatpush1.msra.mxu0 0.0
        %817 = vmatprep.subr.mxu0 0.0
        %818 = vmatpush1.msra.mxu0 0.0
        %819 = vmatprep.subr.mxu0 0.0
        %820 = vmatpush1.msra.mxu0 0.0
        %821 = vmatprep.subr.mxu0 0.0
        %822 = vmatpush1.msra.mxu0 0.0
        %823 = vmatprep.subr.mxu0 0.0
        %824 = vmatpush1.msra.mxu0 0.0
        %825 = vmatprep.subr.mxu0 0.0
        %826 = vmatpush1.msra.mxu0 0.0
        %827 = vmatprep.subr.mxu0 0.0
        %828 = vmatpush1.msra.mxu0 0.0
        %829 = vmatprep.subr.mxu0 0.0
        %830 = vmatpush1.msra.mxu0 0.0
        %831 = vmatprep.mubr.f32.mxu0 0.0
        %832 = vmatmul.mubr.f32.gmra.mrb[0].mxu0 %v765
        %v833 = vpop.f32.mrb[0].mxu0
        %v834 = vadd.f32 0.0, %v833
        %v835 = vpop.f32.mrb[0].mxu0
        %836 = vdwg.mxu0
        %837 = vst.msk [vmem:[%s431] sm:$0xff] %vm676, %v834
        %838 = vrot.lane.b32.xlu0 %v671, 120
        %v839 = vpop.permute.xlu0 %838
        %840 = vrot.lane.b32.xlu0 %v674, 120
        %v841 = vpop.permute.xlu0 %840
        %v842 = vsel %vm676, %v839, 0
        %v844 = vsel %vm676, %v841, 0
        %846 = vmatprep.subr.mxu0 0.0
        %847 = vmatpush1.xpose.msra.mxu0 %v844
        %848 = vmatprep.subr.mxu0 0.0
        %849 = vmatpush1.xpose.msra.mxu0 0.0
        %850 = vmatprep.subr.mxu0 0.0
        %851 = vmatpush1.xpose.msra.mxu0 0.0
        %852 = vmatprep.subr.mxu0 0.0
        %853 = vmatpush1.xpose.msra.mxu0 0.0
        %854 = vmatprep.subr.mxu0 0.0
        %855 = vmatpush1.xpose.msra.mxu0 0.0
        %856 = vmatprep.subr.mxu0 0.0
        %857 = vmatpush1.xpose.msra.mxu0 0.0
        %858 = vmatprep.subr.mxu0 0.0
        %859 = vmatpush1.xpose.msra.mxu0 0.0
        %860 = vmatprep.subr.mxu0 0.0
        %861 = vmatpush1.xpose.msra.mxu0 0.0
        %862 = vmatprep.subr.mxu0 0.0
        %863 = vmatpush1.xpose.msra.mxu0 0.0
        %864 = vmatprep.subr.mxu0 0.0
        %865 = vmatpush1.xpose.msra.mxu0 0.0
        %866 = vmatprep.subr.mxu0 0.0
        %867 = vmatpush1.xpose.msra.mxu0 0.0
        %868 = vmatprep.subr.mxu0 0.0
        %869 = vmatpush1.xpose.msra.mxu0 0.0
        %870 = vmatprep.subr.mxu0 0.0
        %871 = vmatpush1.xpose.msra.mxu0 0.0
        %872 = vmatprep.subr.mxu0 0.0
        %873 = vmatpush1.xpose.msra.mxu0 0.0
        %874 = vmatprep.subr.mxu0 0.0
        %875 = vmatpush1.xpose.msra.mxu0 0.0
        %876 = vmatprep.subr.mxu0 0.0
        %877 = vmatpush1.xpose.msra.mxu0 0.0
        %878 = vmatprep.subr.mxu0 0.0
        %879 = vmatpush1.xpose.msra.mxu0 0.0
        %880 = vmatprep.subr.mxu0 0.0
        %881 = vmatpush1.xpose.msra.mxu0 0.0
        %882 = vmatprep.subr.mxu0 0.0
        %883 = vmatpush1.xpose.msra.mxu0 0.0
        %884 = vmatprep.subr.mxu0 0.0
        %885 = vmatpush1.xpose.msra.mxu0 0.0
        %886 = vmatprep.subr.mxu0 0.0
        %887 = vmatpush1.xpose.msra.mxu0 0.0
        %888 = vmatprep.subr.mxu0 0.0
        %889 = vmatpush1.xpose.msra.mxu0 0.0
        %890 = vmatprep.subr.mxu0 0.0
        %891 = vmatpush1.xpose.msra.mxu0 0.0
        %892 = vmatprep.subr.mxu0 0.0
        %893 = vmatpush1.xpose.msra.mxu0 0.0
        %894 = vmatprep.subr.mxu0 0.0
        %895 = vmatpush1.xpose.msra.mxu0 0.0
        %896 = vmatprep.subr.mxu0 0.0
        %897 = vmatpush1.xpose.msra.mxu0 0.0
        %898 = vmatprep.subr.mxu0 0.0
        %899 = vmatpush1.xpose.msra.mxu0 0.0
        %900 = vmatprep.subr.mxu0 0.0
        %901 = vmatpush1.xpose.msra.mxu0 0.0
        %902 = vmatprep.subr.mxu0 0.0
        %903 = vmatpush1.xpose.msra.mxu0 0.0
        %904 = vmatprep.subr.mxu0 0.0
        %905 = vmatpush1.xpose.msra.mxu0 0.0
        %906 = vmatprep.subr.mxu0 0.0
        %907 = vmatpush1.xpose.msra.mxu0 0.0
        %908 = vmatprep.subr.mxu0 0.0
        %909 = vmatpush1.xpose.msra.mxu0 0.0
        %910 = vmatprep.mubr.f32.mxu0 0.0
        %911 = vmatmul.mubr.f32.gmra.mrb[0].mxu0 %v842
        %v912 = vpop.f32.mrb[0].mxu0
        %v913 = vadd.f32 0.0, %v912
        %v914 = vpop.f32.mrb[0].mxu0
        %915 = vdwg.mxu0
        %v916 = vsel %vm676, %v913, -inf
        %917 = vmax.xlane.f32.xlu0 %v916
        %v918 = vpop.xlane.xlu0 %917
        %v919 = vsub.f32 %v913, %v918
        %v920 = vmul.f32 %v919, 1.442695
        %v921 = vpow.pop %v920
        %v922 = vsel %vm676, %v921, 0.0
        %923 = vadd.xlane.f32.xlu0 %v922
        %v924 = vpop.xlane.xlu0 %923
        %v925 = vrcp.pop %v924
        %v926 = vmul.f32 %v921, %v925
        %928 = vrot.lane.b32.xlu0 %v675, 120
        %v929 = vpop.permute.xlu0 %928
        %v932 = vsel %vm676, %v926, 0
        %934 = vmatprep.subr.mxu0 0.0
        %935 = vmatpush1.msra.mxu0 %v929
        %936 = vmatprep.subr.mxu0 0.0
        %937 = vmatpush1.msra.mxu0 0.0
        %938 = vmatprep.subr.mxu0 0.0
        %939 = vmatpush1.msra.mxu0 0.0
        %940 = vmatprep.subr.mxu0 0.0
        %941 = vmatpush1.msra.mxu0 0.0
        %942 = vmatprep.subr.mxu0 0.0
        %943 = vmatpush1.msra.mxu0 0.0
        %944 = vmatprep.subr.mxu0 0.0
        %945 = vmatpush1.msra.mxu0 0.0
        %946 = vmatprep.subr.mxu0 0.0
        %947 = vmatpush1.msra.mxu0 0.0
        %948 = vmatprep.subr.mxu0 0.0
        %949 = vmatpush1.msra.mxu0 0.0
        %950 = vmatprep.subr.mxu0 0.0
        %951 = vmatpush1.msra.mxu0 0.0
        %952 = vmatprep.subr.mxu0 0.0
        %953 = vmatpush1.msra.mxu0 0.0
        %954 = vmatprep.subr.mxu0 0.0
        %955 = vmatpush1.msra.mxu0 0.0
        %956 = vmatprep.subr.mxu0 0.0
        %957 = vmatpush1.msra.mxu0 0.0
        %958 = vmatprep.subr.mxu0 0.0
        %959 = vmatpush1.msra.mxu0 0.0
        %960 = vmatprep.subr.mxu0 0.0
        %961 = vmatpush1.msra.mxu0 0.0
        %962 = vmatprep.subr.mxu0 0.0
        %963 = vmatpush1.msra.mxu0 0.0
        %964 = vmatprep.subr.mxu0 0.0
        %965 = vmatpush1.msra.mxu0 0.0
        %966 = vmatprep.subr.mxu0 0.0
        %967 = vmatpush1.msra.mxu0 0.0
        %968 = vmatprep.subr.mxu0 0.0
        %969 = vmatpush1.msra.mxu0 0.0
        %970 = vmatprep.subr.mxu0 0.0
        %971 = vmatpush1.msra.mxu0 0.0
        %972 = vmatprep.subr.mxu0 0.0
        %973 = vmatpush1.msra.mxu0 0.0
        %974 = vmatprep.subr.mxu0 0.0
        %975 = vmatpush1.msra.mxu0 0.0
        %976 = vmatprep.subr.mxu0 0.0
        %977 = vmatpush1.msra.mxu0 0.0
        %978 = vmatprep.subr.mxu0 0.0
        %979 = vmatpush1.msra.mxu0 0.0
        %980 = vmatprep.subr.mxu0 0.0
        %981 = vmatpush1.msra.mxu0 0.0
        %982 = vmatprep.subr.mxu0 0.0
        %983 = vmatpush1.msra.mxu0 0.0
        %984 = vmatprep.subr.mxu0 0.0
        %985 = vmatpush1.msra.mxu0 0.0
        %986 = vmatprep.subr.mxu0 0.0
        %987 = vmatpush1.msra.mxu0 0.0
        %988 = vmatprep.subr.mxu0 0.0
        %989 = vmatpush1.msra.mxu0 0.0
        %990 = vmatprep.subr.mxu0 0.0
        %991 = vmatpush1.msra.mxu0 0.0
        %992 = vmatprep.subr.mxu0 0.0
        %993 = vmatpush1.msra.mxu0 0.0
        %994 = vmatprep.subr.mxu0 0.0
        %995 = vmatpush1.msra.mxu0 0.0
        %996 = vmatprep.subr.mxu0 0.0
        %997 = vmatpush1.msra.mxu0 0.0
        %998 = vmatprep.mubr.f32.mxu0 0.0
        %999 = vmatmul.mubr.f32.gmra.mrb[0].mxu0 %v932
        %v1000 = vpop.f32.mrb[0].mxu0
        %v1001 = vadd.f32 0.0, %v1000
        %v1002 = vpop.f32.mrb[0].mxu0
        %1003 = vdwg.mxu0
        %1005 = vrot.lane.b32.xlu0 %v1001, 8
        %v1006 = vpop.permute.xlu0 %1005
        %vm1008 = vcmask 130112
        %1009 = vst.msk [vmem:[%s431] sm:$0xff] %vm1008, %v1006
        %1010 = vrot.lane.b32.xlu0 %v671, 112
        %v1011 = vpop.permute.xlu0 %1010
        %1012 = vrot.lane.b32.xlu0 %v674, 112
        %v1013 = vpop.permute.xlu0 %1012
        %v1014 = vsel %vm676, %v1011, 0
        %v1016 = vsel %vm676, %v1013, 0
        %1018 = vmatprep.subr.mxu0 0.0
        %1019 = vmatpush1.xpose.msra.mxu0 %v1016
        %1020 = vmatprep.subr.mxu0 0.0
        %1021 = vmatpush1.xpose.msra.mxu0 0.0
        %1022 = vmatprep.subr.mxu0 0.0
        %1023 = vmatpush1.xpose.msra.mxu0 0.0
        %1024 = vmatprep.subr.mxu0 0.0
        %1025 = vmatpush1.xpose.msra.mxu0 0.0
        %1026 = vmatprep.subr.mxu0 0.0
        %1027 = vmatpush1.xpose.msra.mxu0 0.0
        %1028 = vmatprep.subr.mxu0 0.0
        %1029 = vmatpush1.xpose.msra.mxu0 0.0
        %1030 = vmatprep.subr.mxu0 0.0
        %1031 = vmatpush1.xpose.msra.mxu0 0.0
        %1032 = vmatprep.subr.mxu0 0.0
        %1033 = vmatpush1.xpose.msra.mxu0 0.0
        %1034 = vmatprep.subr.mxu0 0.0
        %1035 = vmatpush1.xpose.msra.mxu0 0.0
        %1036 = vmatprep.subr.mxu0 0.0
        %1037 = vmatpush1.xpose.msra.mxu0 0.0
        %1038 = vmatprep.subr.mxu0 0.0
        %1039 = vmatpush1.xpose.msra.mxu0 0.0
        %1040 = vmatprep.subr.mxu0 0.0
        %1041 = vmatpush1.xpose.msra.mxu0 0.0
        %1042 = vmatprep.subr.mxu0 0.0
        %1043 = vmatpush1.xpose.msra.mxu0 0.0
        %1044 = vmatprep.subr.mxu0 0.0
        %1045 = vmatpush1.xpose.msra.mxu0 0.0
        %1046 = vmatprep.subr.mxu0 0.0
        %1047 = vmatpush1.xpose.msra.mxu0 0.0
        %1048 = vmatprep.subr.mxu0 0.0
        %1049 = vmatpush1.xpose.msra.mxu0 0.0
        %1050 = vmatprep.subr.mxu0 0.0
        %1051 = vmatpush1.xpose.msra.mxu0 0.0
        %1052 = vmatprep.subr.mxu0 0.0
        %1053 = vmatpush1.xpose.msra.mxu0 0.0
        %1054 = vmatprep.subr.mxu0 0.0
        %1055 = vmatpush1.xpose.msra.mxu0 0.0
        %1056 = vmatprep.subr.mxu0 0.0
        %1057 = vmatpush1.xpose.msra.mxu0 0.0
        %1058 = vmatprep.subr.mxu0 0.0
        %1059 = vmatpush1.xpose.msra.mxu0 0.0
        %1060 = vmatprep.subr.mxu0 0.0
        %1061 = vmatpush1.xpose.msra.mxu0 0.0
        %1062 = vmatprep.subr.mxu0 0.0
        %1063 = vmatpush1.xpose.msra.mxu0 0.0
        %1064 = vmatprep.subr.mxu0 0.0
        %1065 = vmatpush1.xpose.msra.mxu0 0.0
        %1066 = vmatprep.subr.mxu0 0.0
        %1067 = vmatpush1.xpose.msra.mxu0 0.0
        %1068 = vmatprep.subr.mxu0 0.0
        %1069 = vmatpush1.xpose.msra.mxu0 0.0
        %1070 = vmatprep.subr.mxu0 0.0
        %1071 = vmatpush1.xpose.msra.mxu0 0.0
        %1072 = vmatprep.subr.mxu0 0.0
        %1073 = vmatpush1.xpose.msra.mxu0 0.0
        %1074 = vmatprep.subr.mxu0 0.0
        %1075 = vmatpush1.xpose.msra.mxu0 0.0
        %1076 = vmatprep.subr.mxu0 0.0
        %1077 = vmatpush1.xpose.msra.mxu0 0.0
        %1078 = vmatprep.subr.mxu0 0.0
        %1079 = vmatpush1.xpose.msra.mxu0 0.0
        %1080 = vmatprep.subr.mxu0 0.0
        %1081 = vmatpush1.xpose.msra.mxu0 0.0
        %1082 = vmatprep.mubr.f32.mxu0 0.0
        %1083 = vmatmul.mubr.f32.gmra.mrb[0].mxu0 %v1014
        %v1084 = vpop.f32.mrb[0].mxu0
        %v1085 = vadd.f32 0.0, %v1084
        %v1086 = vpop.f32.mrb[0].mxu0
        %1087 = vdwg.mxu0
        %v1088 = vsel %vm676, %v1085, -inf
        %1089 = vmax.xlane.f32.xlu0 %v1088
        %v1090 = vpop.xlane.xlu0 %1089
        %v1091 = vsub.f32 %v1085, %v1090
        %v1092 = vmul.f32 %v1091, 1.442695
        %v1093 = vpow.pop %v1092
        %v1094 = vsel %vm676, %v1093, 0.0
        %1095 = vadd.xlane.f32.xlu0 %v1094
        %v1096 = vpop.xlane.xlu0 %1095
        %v1097 = vrcp.pop %v1096
        %v1098 = vmul.f32 %v1093, %v1097
        %1099 = vrot.lane.b32.xlu0 %v675, 112
        %v1100 = vpop.permute.xlu0 %1099
        %v1103 = vsel %vm676, %v1098, 0
        %1105 = vmatprep.subr.mxu0 0.0
        %1106 = vmatpush1.msra.mxu0 %v1100
        %1107 = vmatprep.subr.mxu0 0.0
        %1108 = vmatpush1.msra.mxu0 0.0
        %1109 = vmatprep.subr.mxu0 0.0
        %1110 = vmatpush1.msra.mxu0 0.0
        %1111 = vmatprep.subr.mxu0 0.0
        %1112 = vmatpush1.msra.mxu0 0.0
        %1113 = vmatprep.subr.mxu0 0.0
        %1114 = vmatpush1.msra.mxu0 0.0
        %1115 = vmatprep.subr.mxu0 0.0
        %1116 = vmatpush1.msra.mxu0 0.0
        %1117 = vmatprep.subr.mxu0 0.0
        %1118 = vmatpush1.msra.mxu0 0.0
        %1119 = vmatprep.subr.mxu0 0.0
        %1120 = vmatpush1.msra.mxu0 0.0
        %1121 = vmatprep.subr.mxu0 0.0
        %1122 = vmatpush1.msra.mxu0 0.0
        %1123 = vmatprep.subr.mxu0 0.0
        %1124 = vmatpush1.msra.mxu0 0.0
        %1125 = vmatprep.subr.mxu0 0.0
        %1126 = vmatpush1.msra.mxu0 0.0
        %1127 = vmatprep.subr.mxu0 0.0
        %1128 = vmatpush1.msra.mxu0 0.0
        %1129 = vmatprep.subr.mxu0 0.0
        %1130 = vmatpush1.msra.mxu0 0.0
        %1131 = vmatprep.subr.mxu0 0.0
        %1132 = vmatpush1.msra.mxu0 0.0
        %1133 = vmatprep.subr.mxu0 0.0
        %1134 = vmatpush1.msra.mxu0 0.0
        %1135 = vmatprep.subr.mxu0 0.0
        %1136 = vmatpush1.msra.mxu0 0.0
        %1137 = vmatprep.subr.mxu0 0.0
        %1138 = vmatpush1.msra.mxu0 0.0
        %1139 = vmatprep.subr.mxu0 0.0
        %1140 = vmatpush1.msra.mxu0 0.0
        %1141 = vmatprep.subr.mxu0 0.0
        %1142 = vmatpush1.msra.mxu0 0.0
        %1143 = vmatprep.subr.mxu0 0.0
        %1144 = vmatpush1.msra.mxu0 0.0
        %1145 = vmatprep.subr.mxu0 0.0
        %1146 = vmatpush1.msra.mxu0 0.0
        %1147 = vmatprep.subr.mxu0 0.0
        %1148 = vmatpush1.msra.mxu0 0.0
        %1149 = vmatprep.subr.mxu0 0.0
        %1150 = vmatpush1.msra.mxu0 0.0
        %1151 = vmatprep.subr.mxu0 0.0
        %1152 = vmatpush1.msra.mxu0 0.0
        %1153 = vmatprep.subr.mxu0 0.0
        %1154 = vmatpush1.msra.mxu0 0.0
        %1155 = vmatprep.subr.mxu0 0.0
        %1156 = vmatpush1.msra.mxu0 0.0
        %1157 = vmatprep.subr.mxu0 0.0
        %1158 = vmatpush1.msra.mxu0 0.0
        %1159 = vmatprep.subr.mxu0 0.0
        %1160 = vmatpush1.msra.mxu0 0.0
        %1161 = vmatprep.subr.mxu0 0.0
        %1162 = vmatpush1.msra.mxu0 0.0
        %1163 = vmatprep.subr.mxu0 0.0
        %1164 = vmatpush1.msra.mxu0 0.0
        %1165 = vmatprep.subr.mxu0 0.0
        %1166 = vmatpush1.msra.mxu0 0.0
        %1167 = vmatprep.subr.mxu0 0.0
        %1168 = vmatpush1.msra.mxu0 0.0
        %1169 = vmatprep.mubr.f32.mxu0 0.0
        %1170 = vmatmul.mubr.f32.gmra.mrb[0].mxu0 %v1103
        %v1171 = vpop.f32.mrb[0].mxu0
        %v1172 = vadd.f32 0.0, %v1171
        %v1173 = vpop.f32.mrb[0].mxu0
        %1174 = vdwg.mxu0
        %1176 = vrot.lane.b32.xlu0 %v1172, 16
        %v1177 = vpop.permute.xlu0 %1176
        %vm1179 = vcmask 195712
        %1180 = vst.msk [vmem:[%s431] sm:$0xff] %vm1179, %v1177
        %1181 = vrot.lane.b32.xlu0 %v671, 104
        %v1182 = vpop.permute.xlu0 %1181
        %1183 = vrot.lane.b32.xlu0 %v674, 104
        %v1184 = vpop.permute.xlu0 %1183
        %v1185 = vsel %vm676, %v1182, 0
        %v1187 = vsel %vm676, %v1184, 0
        %1189 = vmatprep.subr.mxu0 0.0
        %1190 = vmatpush1.xpose.msra.mxu0 %v1187
        %1191 = vmatprep.subr.mxu0 0.0
        %1192 = vmatpush1.xpose.msra.mxu0 0.0
        %1193 = vmatprep.subr.mxu0 0.0
        %1194 = vmatpush1.xpose.msra.mxu0 0.0
        %1195 = vmatprep.subr.mxu0 0.0
        %1196 = vmatpush1.xpose.msra.mxu0 0.0
        %1197 = vmatprep.subr.mxu0 0.0
        %1198 = vmatpush1.xpose.msra.mxu0 0.0
        %1199 = vmatprep.subr.mxu0 0.0
        %1200 = vmatpush1.xpose.msra.mxu0 0.0
        %1201 = vmatprep.subr.mxu0 0.0
        %1202 = vmatpush1.xpose.msra.mxu0 0.0
        %1203 = vmatprep.subr.mxu0 0.0
        %1204 = vmatpush1.xpose.msra.mxu0 0.0
        %1205 = vmatprep.subr.mxu0 0.0
        %1206 = vmatpush1.xpose.msra.mxu0 0.0
        %1207 = vmatprep.subr.mxu0 0.0
        %1208 = vmatpush1.xpose.msra.mxu0 0.0
        %1209 = vmatprep.subr.mxu0 0.0
        %1210 = vmatpush1.xpose.msra.mxu0 0.0
        %1211 = vmatprep.subr.mxu0 0.0
        %1212 = vmatpush1.xpose.msra.mxu0 0.0
        %1213 = vmatprep.subr.mxu0 0.0
        %1214 = vmatpush1.xpose.msra.mxu0 0.0
        %1215 = vmatprep.subr.mxu0 0.0
        %1216 = vmatpush1.xpose.msra.mxu0 0.0
        %1217 = vmatprep.subr.mxu0 0.0
        %1218 = vmatpush1.xpose.msra.mxu0 0.0
        %1219 = vmatprep.subr.mxu0 0.0
        %1220 = vmatpush1.xpose.msra.mxu0 0.0
        %1221 = vmatprep.subr.mxu0 0.0
        %1222 = vmatpush1.xpose.msra.mxu0 0.0
        %1223 = vmatprep.subr.mxu0 0.0
        %1224 = vmatpush1.xpose.msra.mxu0 0.0
        %1225 = vmatprep.subr.mxu0 0.0
        %1226 = vmatpush1.xpose.msra.mxu0 0.0
        %1227 = vmatprep.subr.mxu0 0.0
        %1228 = vmatpush1.xpose.msra.mxu0 0.0
        %1229 = vmatprep.subr.mxu0 0.0
        %1230 = vmatpush1.xpose.msra.mxu0 0.0
        %1231 = vmatprep.subr.mxu0 0.0
        %1232 = vmatpush1.xpose.msra.mxu0 0.0
        %1233 = vmatprep.subr.mxu0 0.0
        %1234 = vmatpush1.xpose.msra.mxu0 0.0
        %1235 = vmatprep.subr.mxu0 0.0
        %1236 = vmatpush1.xpose.msra.mxu0 0.0
        %1237 = vmatprep.subr.mxu0 0.0
        %1238 = vmatpush1.xpose.msra.mxu0 0.0
        %1239 = vmatprep.subr.mxu0 0.0
        %1240 = vmatpush1.xpose.msra.mxu0 0.0
        %1241 = vmatprep.subr.mxu0 0.0
        %1242 = vmatpush1.xpose.msra.mxu0 0.0
        %1243 = vmatprep.subr.mxu0 0.0
        %1244 = vmatpush1.xpose.msra.mxu0 0.0
        %1245 = vmatprep.subr.mxu0 0.0
        %1246 = vmatpush1.xpose.msra.mxu0 0.0
        %1247 = vmatprep.subr.mxu0 0.0
        %1248 = vmatpush1.xpose.msra.mxu0 0.0
        %1249 = vmatprep.subr.mxu0 0.0
        %1250 = vmatpush1.xpose.msra.mxu0 0.0
        %1251 = vmatprep.subr.mxu0 0.0
        %1252 = vmatpush1.xpose.msra.mxu0 0.0
        %1253 = vmatprep.mubr.f32.mxu0 0.0
        %1254 = vmatmul.mubr.f32.gmra.mrb[0].mxu0 %v1185
        %v1255 = vpop.f32.mrb[0].mxu0
        %v1256 = vadd.f32 0.0, %v1255
        %v1257 = vpop.f32.mrb[0].mxu0
        %1258 = vdwg.mxu0
        %v1259 = vsel %vm676, %v1256, -inf
        %1260 = vmax.xlane.f32.xlu0 %v1259
        %v1261 = vpop.xlane.xlu0 %1260
        %v1262 = vsub.f32 %v1256, %v1261
        %v1263 = vmul.f32 %v1262, 1.442695
        %v1264 = vpow.pop %v1263
        %v1265 = vsel %vm676, %v1264, 0.0
        %1266 = vadd.xlane.f32.xlu0 %v1265
        %v1267 = vpop.xlane.xlu0 %1266
        %v1268 = vrcp.pop %v1267
        %v1269 = vmul.f32 %v1264, %v1268
        %1270 = vrot.lane.b32.xlu0 %v675, 104
        %v1271 = vpop.permute.xlu0 %1270
        %v1274 = vsel %vm676, %v1269, 0
        %1276 = vmatprep.subr.mxu0 0.0
        %1277 = vmatpush1.msra.mxu0 %v1271
        %1278 = vmatprep.subr.mxu0 0.0
        %1279 = vmatpush1.msra.mxu0 0.0
        %1280 = vmatprep.subr.mxu0 0.0
        %1281 = vmatpush1.msra.mxu0 0.0
        %1282 = vmatprep.subr.mxu0 0.0
        %1283 = vmatpush1.msra.mxu0 0.0
        %1284 = vmatprep.subr.mxu0 0.0
        %1285 = vmatpush1.msra.mxu0 0.0
        %1286 = vmatprep.subr.mxu0 0.0
        %1287 = vmatpush1.msra.mxu0 0.0
        %1288 = vmatprep.subr.mxu0 0.0
        %1289 = vmatpush1.msra.mxu0 0.0
        %1290 = vmatprep.subr.mxu0 0.0
        %1291 = vmatpush1.msra.mxu0 0.0
        %1292 = vmatprep.subr.mxu0 0.0
        %1293 = vmatpush1.msra.mxu0 0.0
        %1294 = vmatprep.subr.mxu0 0.0
        %1295 = vmatpush1.msra.mxu0 0.0
        %1296 = vmatprep.subr.mxu0 0.0
        %1297 = vmatpush1.msra.mxu0 0.0
        %1298 = vmatprep.subr.mxu0 0.0
        %1299 = vmatpush1.msra.mxu0 0.0
        %1300 = vmatprep.subr.mxu0 0.0
        %1301 = vmatpush1.msra.mxu0 0.0
        %1302 = vmatprep.subr.mxu0 0.0
        %1303 = vmatpush1.msra.mxu0 0.0
        %1304 = vmatprep.subr.mxu0 0.0
        %1305 = vmatpush1.msra.mxu0 0.0
        %1306 = vmatprep.subr.mxu0 0.0
        %1307 = vmatpush1.msra.mxu0 0.0
        %1308 = vmatprep.subr.mxu0 0.0
        %1309 = vmatpush1.msra.mxu0 0.0
        %1310 = vmatprep.subr.mxu0 0.0
        %1311 = vmatpush1.msra.mxu0 0.0
        %1312 = vmatprep.subr.mxu0 0.0
        %1313 = vmatpush1.msra.mxu0 0.0
        %1314 = vmatprep.subr.mxu0 0.0
        %1315 = vmatpush1.msra.mxu0 0.0
        %1316 = vmatprep.subr.mxu0 0.0
        %1317 = vmatpush1.msra.mxu0 0.0
        %1318 = vmatprep.subr.mxu0 0.0
        %1319 = vmatpush1.msra.mxu0 0.0
        %1320 = vmatprep.subr.mxu0 0.0
        %1321 = vmatpush1.msra.mxu0 0.0
        %1322 = vmatprep.subr.mxu0 0.0
        %1323 = vmatpush1.msra.mxu0 0.0
        %1324 = vmatprep.subr.mxu0 0.0
        %1325 = vmatpush1.msra.mxu0 0.0
        %1326 = vmatprep.subr.mxu0 0.0
        %1327 = vmatpush1.msra.mxu0 0.0
        %1328 = vmatprep.subr.mxu0 0.0
        %1329 = vmatpush1.msra.mxu0 0.0
        %1330 = vmatprep.subr.mxu0 0.0
        %1331 = vmatpush1.msra.mxu0 0.0
        %1332 = vmatprep.subr.mxu0 0.0
        %1333 = vmatpush1.msra.mxu0 0.0
        %1334 = vmatprep.subr.mxu0 0.0
        %1335 = vmatpush1.msra.mxu0 0.0
        %1336 = vmatprep.subr.mxu0 0.0
        %1337 = vmatpush1.msra.mxu0 0.0
        %1338 = vmatprep.subr.mxu0 0.0
        %1339 = vmatpush1.msra.mxu0 0.0
        %1340 = vmatprep.mubr.f32.mxu0 0.0
        %1341 = vmatmul.mubr.f32.gmra.mrb[0].mxu0 %v1274
        %v1342 = vpop.f32.mrb[0].mxu0
        %v1343 = vadd.f32 0.0, %v1342
        %v1344 = vpop.f32.mrb[0].mxu0
        %1345 = vdwg.mxu0
        %1347 = vrot.lane.b32.xlu0 %v1343, 24
        %v1348 = vpop.permute.xlu0 %1347
        %vm1350 = vcmask 261312
        %1351 = vst.msk [vmem:[%s431] sm:$0xff] %vm1350, %v1348
        %s1352 = sand.u32 %s217, 1
        %s1353 = scalar_lea.sflag [#allocation6], %s1352
        %s1354 = sand.u32 %s217, 1
        %s1355 = smul.addr %s1354, 8
        %s1356 = scalar_lea.vmem [#allocation15], %s1355
        // Predicated region
        $region73: #{tpu_custom_call.1} parent=43 // pred_check
          %p1357 = pneg %p227
        $region74: #{tpu_custom_call.1} parent=43 // pred_check_branch
          %1359 = sbr.rel (%p1357) target = $region76
        $region75: #{tpu_custom_call.1} parent=43 // pred_region
          %s1361 = ssub.s32 128, 128
          %1362 = vsyncadd %s1353, %s1361
          %s1363 = sadd.s32 %s34, %s35
          %s1364 = sadd.s32 %s1363, %s33
          %s1365 = smul.addr %s1364, 128
          %s1366 = scalar_lea.hbm %s6, %s1365
          %s1368 = sshll.u32 %s1356, 4
          %s1369 = int_to_ptr.vmem [resolvable:$true] %s1368
          %1371 = dma.vmem_to_hbm [thread:$0]  %s1369, 128, %s1366, %s1353
        $region76: #{tpu_custom_call.1} parent=43 // pred_fallthru
          _
      $region44: #{tpu_custom_call.1} parent=5 // pred_fallthru
        _
      %p1372 = scmp.le.s32.totalorder 2, %s23
      // Predicated region
      $region77: #{tpu_custom_call.1} parent=5 // pred_check
        %p1373 = pneg %p1372
      $region78: #{tpu_custom_call.1} parent=5 // pred_check_branch
        %1375 = sbr.rel (%p1373) target = $region80
      $region79: #{tpu_custom_call.1} parent=5 // pred_region
        %s1376 = ssub.s32 %s23, 2
        // Predicated region
        $region81: #{tpu_custom_call.1} parent=79 // pred_check
          %p1377 = pneg %p233
        $region82: #{tpu_custom_call.1} parent=79 // pred_check_branch
          %1379 = sbr.rel (%p1377) target = $region84
        $region83: #{tpu_custom_call.1} parent=79 // pred_region
          %s1380 = sand.u32 %s218, 1
          %s1381 = scalar_lea.sflag [#allocation6], %s1380
          %s1382 = sand.u32 %s218, 1
          %s1383 = smul.addr %s1382, 8
          %s1384 = scalar_lea.vmem [#allocation15], %s1383
          %1385 = dma.done %s1381, 128
        $region84: #{tpu_custom_call.1} parent=79 // pred_fallthru
          _
      $region80: #{tpu_custom_call.1} parent=5 // pred_fallthru
        _
    $region6: #{tpu_custom_call.1} parent=1 // loop_footer
      %s27 = sadd.s32 1, %s23
    $region7: #{tpu_custom_call.1} parent=1 // loop_footer_branch
      %22 = sbr.rel target = $region3
    $region8: #{tpu_custom_call.1} parent=1 // loop_exit
      _
    %1386 = vsyncpa [#allocation5], 1
    %s1387 = scalar_lea.sflag [#allocation5], 1
    %1388 = vsyncpa %s1387, 1
    %1389 = vsyncpa [#allocation8], 1
    %s1390 = scalar_lea.sflag [#allocation8], 1
    %1391 = vsyncpa %s1390, 1
    %1392 = vsyncpa [#allocation11], 1
    %1393 = vsyncpa [#allocation14], 1
    %1394 = vsyncpa [#allocation6], 1
    %s1395 = scalar_lea.sflag [#allocation6], 1
    %1396 = vsyncpa %s1395, 1

</llo_original>
